<compile_context>
chip_gen: v7x
topology: tpu7x:2x2x1
jax: 0.10.0
libtpu: 0.0.40
codegen_flags: <defaults>
</compile_context>

<pallas_src>
import jax
import jax.numpy as jnp
import numpy as np
from jax.experimental import pallas as pl
from jax.experimental.pallas import tpu as pltpu

OUT_LANES = 128   # lane-dense output width; member e's Q lives in column e (< E)


def _make_ensemble_q_kernel(num_networks: int, hidden: int):
    E, H = num_networks, hidden

    def kernel(x_ref, w1_ref, b1_ref, w2_ref, b2_ref, w3_ref, b3_ref, q_ref):
        # ---- Layer 1, fused across all E members: one (Bt, E*H) MXU pass, K = Din ----
        h1 = jnp.dot(x_ref[...], w1_ref[...], preferred_element_type=jnp.float32)
        h1 = jnp.maximum(h1 + b1_ref[...], 0.0)              # (Bt, E*H) f32 (VPU relu)
        h1c = h1.astype(w2_ref.dtype)                        # one whole-tile cast (bf16 path)

        # ---- Layer 2 per member (static unroll; E is tiny).  Slices are lane-aligned
        #      because H % 128 == 0, so no layout copies. ----
        h2_blocks = []
        for e in range(E):
            h2 = jnp.dot(h1c[:, e * H:(e + 1) * H], w2_ref[e],
                         preferred_element_type=jnp.float32) + b2_ref[e]
            h2_blocks.append(jnp.maximum(h2, 0.0))            # (Bt, H) f32
        h2_all = jnp.concatenate(h2_blocks, axis=-1)          # (Bt, E*H), lane-aligned blocks

        # ---- Head: single lane-dense MXU matmul with zero-padded block-structured W3.
        #      Column e of the result is member e's Q; columns >= E stay zero. ----
        q = jnp.dot(h2_all.astype(w3_ref.dtype), w3_ref[...],
                    preferred_element_type=jnp.float32) + b3_ref[...]
        q_ref[...] = q.astype(q_ref.dtype)                    # single (Bt, 128) unmasked store

    return kernel


def prepare_params(params, weights_dtype=None):
    """One-time repack of stacked per-member weights into the kernel layout.

    Call ONCE per parameter update (or inside the same jit as the training step),
    not per forward call.
    """
    W1, b1, W2, b2, W3, b3 = params      # (E,Din,H),(E,1,H),(E,H,H),(E,1,H),(E,H,1),(E,1,1)
    E, Din, H = W1.shape
    assert H % 128 == 0 and (E * H) % 128 == 0, "hidden size must be a multiple of 128"
    assert E <= OUT_LANES
    wdt = jnp.float32 if weights_dtype is None else weights_dtype

    W1_all = jnp.transpose(W1, (1, 0, 2)).reshape(Din, E * H).astype(wdt)   # (Din, E*H)
    b1_all = jnp.transpose(b1, (1, 0, 2)).reshape(1, E * H).astype(jnp.float32)
    W2c = W2.astype(wdt)                                                    # (E, H, H)
    b2_f32 = b2.astype(jnp.float32)                                         # (E, 1, H)
    # Block-structured zero-padded head: W3_pad[e*H:(e+1)*H, e] = W3[e, :, 0].
    W3_pad = (jnp.zeros((E, H, OUT_LANES), jnp.float32)
              .at[jnp.arange(E), :, jnp.arange(E)].set(W3[..., 0])
              .reshape(E * H, OUT_LANES).astype(wdt))                       # (E*H, 128)
    b3_pad = jnp.zeros((1, OUT_LANES), jnp.float32).at[0, :E].set(b3.reshape(E))
    return (W1_all, b1_all, W2c, b2_f32, W3_pad, b3_pad, E, Din, H, wdt)


def _pick_batch_tile(B, block_b):
    """Large tiles amortize the ~0.35us/step pipeline overhead; keep >= 2 parallel
    steps for big B so v7x can shard the batch across its two TensorCores."""
    if B <= 256:
        return B                                  # single step; block == full array dim
    bt = min(block_b, B)
    if bt >= B:
        bt = (-(-B // 2) + 7) // 8 * 8            # ceil(B/2) rounded up to sublane (8)
    return bt


def ensemble_q_forward(obs, action, packed, return_all=False, block_b=1024):
    """Pallas implementation of EnsembleQNetwork.forward on prepare_params() output."""
    W1_all, b1_all, W2c, b2_f32, W3_pad, b3_pad, E, Din, H, wdt = packed
    B = obs.shape[0]
    assert obs.shape[-1] + action.shape[-1] == Din

    # torch.cat([obs, action], dim=-1); bf16 path intentionally quantizes activations too.
    x = jnp.concatenate([obs, action], axis=-1).astype(wdt)        # (B, Din)

    bt = _pick_batch_tile(B, block_b)
    grid = (pl.cdiv(B, bt),)

    q_pad = pl.pallas_call(
        _make_ensemble_q_kernel(E, H),
        out_shape=jax.ShapeDtypeStruct((B, OUT_LANES), jnp.float32),
        grid=grid,
        in_specs=[
            pl.BlockSpec((bt, Din),          lambda i: (i, 0)),
            pl.BlockSpec((Din, E * H),       lambda i: (0, 0)),
            pl.BlockSpec((1, E * H),         lambda i: (0, 0)),
            pl.BlockSpec((E, H, H),          lambda i: (0, 0, 0)),
            pl.BlockSpec((E, 1, H),          lambda i: (0, 0, 0)),
            pl.BlockSpec((E * H, OUT_LANES), lambda i: (0, 0)),
            pl.BlockSpec((1, OUT_LANES),     lambda i: (0, 0)),
        ],
        out_specs=pl.BlockSpec((bt, OUT_LANES), lambda i: (i, 0)),
        compiler_params=pltpu.CompilerParams(
            dimension_semantics=("parallel",)),     # no accumulator -> batch axis parallel
    )(x, W1_all, b1_all, W2c, b2_f32, W3_pad, b3_pad)

    q_all = q_pad[:, :E]                                     # (B, E), lane-contiguous
    if return_all:
        return jnp.transpose(q_all, (1, 0))[..., None]       # (E, B, 1), matches torch.stack
    return jnp.mean(q_all, axis=-1, keepdims=True)           # (B, 1),  matches .mean(dim=0)


def ensemble_q_uncertainty(obs, action, packed, block_b=1024):
    """EnsembleQNetwork.uncertainty: std over members (done in the cheap JAX wrapper)."""
    q_all = ensemble_q_forward(obs, action, packed, return_all=True, block_b=block_b)
    return jnp.std(q_all, axis=0, ddof=1)                    # matches torch.std (unbiased)


def init_params(key, obs_dim, act_dim, hidden, num_networks):
    """Deterministic PyTorch-Linear-style init, stacked over the ensemble."""
    din = obs_dim + act_dim

    def linear(k, e, fan_in, fan_out):
        bound = 1.0 / np.sqrt(fan_in)
        kw, kb = jax.random.split(k)
        W = jax.random.uniform(kw, (e, fan_in, fan_out), jnp.float32, -bound, bound)
        b = jax.random.uniform(kb, (e, 1, fan_out), jnp.float32, -bound, bound)
        return W, b

    k1, k2, k3 = jax.random.split(key, 3)
    W1, b1 = linear(k1, num_networks, din, hidden)
    W2, b2 = linear(k2, num_networks, hidden, hidden)
    W3, b3 = linear(k3, num_networks, hidden, 1)
    return (W1, b1, W2, b2, W3, b3)


def reference_forward(obs, action, params, return_all=False):
    """Pure-JAX reference mirroring the PyTorch module exactly."""
    x = jnp.concatenate([obs, action], axis=-1).astype(jnp.float32)
    W1, b1, W2, b2, W3, b3 = params
    h1 = jnp.maximum(jnp.einsum('bd,edh->ebh', x, W1) + b1, 0.0)
    h2 = jnp.maximum(jnp.einsum('ebd,edh->ebh', h1, W2) + b2, 0.0)
    q = jnp.einsum('ebd,edh->ebh', h2, W3) + b3               # (E, B, 1)
    return q if return_all else q.mean(axis=0)


if __name__ == "__main__":
    # Small shapes consistent with the module defaults (hidden_dims=[256, 256], 5 members).
    B, OBS_DIM, ACT_DIM = 8, 12, 4
    HIDDEN = 256
    NUM_NETWORKS = 5

    key = jax.random.PRNGKey(0)
    k_obs, k_act, k_par = jax.random.split(key, 3)
    obs = jax.random.normal(k_obs, (B, OBS_DIM), jnp.float32)
    action = jax.random.normal(k_act, (B, ACT_DIM), jnp.float32)
    params = init_params(k_par, OBS_DIM, ACT_DIM, HIDDEN, NUM_NETWORKS)

    # Repack ONCE (hoisted out of the forward path).
    packed = prepare_params(params)

    q_mean = jax.block_until_ready(ensemble_q_forward(obs, action, packed))
    q_all = jax.block_until_ready(
        ensemble_q_forward(obs, action, packed, return_all=True))
    q_std = jax.block_until_ready(ensemble_q_uncertainty(obs, action, packed))

    ref_mean = reference_forward(obs, action, params)
    ref_all = reference_forward(obs, action, params, return_all=True)

    assert q_mean.shape == (B, 1)
    assert q_all.shape == (NUM_NETWORKS, B, 1)
    assert q_std.shape == (B, 1)
    np.testing.assert_allclose(np.asarray(q_all), np.asarray(ref_all),
                               rtol=1e-5, atol=1e-5)
    np.testing.assert_allclose(np.asarray(q_mean), np.asarray(ref_mean),
                               rtol=1e-5, atol=1e-5)

    # bf16 weight/activation fast path (f32 MXU accumulation): halves weight DMA
    # bytes and uses the native bf16 MXU; checked at bf16-appropriate tolerance.
    packed_bf16 = prepare_params(params, weights_dtype=jnp.bfloat16)
    q_mean_bf16 = jax.block_until_ready(
        ensemble_q_forward(obs, action, packed_bf16))
    np.testing.assert_allclose(np.asarray(q_mean_bf16), np.asarray(ref_mean),
                               rtol=1e-1, atol=1e-1)

    print("KERNEL_OK")
</pallas_src>

<mosaic_0001>
module attributes {stable_mosaic.version = 11 : i64} {
  func.func @kernel(%arg0: i32, %arg1: memref<8x16xf32, #tpu.memory_space<vmem>>, %arg2: memref<16x1280xf32, #tpu.memory_space<vmem>>, %arg3: memref<1x1280xf32, #tpu.memory_space<vmem>>, %arg4: memref<5x256x256xf32, #tpu.memory_space<vmem>>, %arg5: memref<5x1x256xf32, #tpu.memory_space<vmem>>, %arg6: memref<1280x128xf32, #tpu.memory_space<vmem>>, %arg7: memref<1x128xf32, #tpu.memory_space<vmem>>, %arg8: memref<8x128xf32, #tpu.memory_space<vmem>>) attributes {dimension_semantics = [#tpu.dimension_semantics<parallel>], iteration_bounds = array<i64: 1>, scalar_prefetch = 0 : i64, scratch_operands = 0 : i64, tpu.core_type = #tpu.core_type<tc>, window_params = [{transform_indices = @transform_0, window_bounds = array<i64: 8, 16>}, {pipeline_mode = #tpu.pipeline_mode<synchronous>, transform_indices = @transform_1, window_bounds = array<i64: 16, 1280>}, {pipeline_mode = #tpu.pipeline_mode<synchronous>, transform_indices = @transform_2, window_bounds = array<i64: 1, 1280>}, {pipeline_mode = #tpu.pipeline_mode<synchronous>, transform_indices = @transform_3, window_bounds = array<i64: 5, 256, 256>}, {pipeline_mode = #tpu.pipeline_mode<synchronous>, transform_indices = @transform_4, window_bounds = array<i64: 5, 1, 256>}, {pipeline_mode = #tpu.pipeline_mode<synchronous>, transform_indices = @transform_5, window_bounds = array<i64: 1280, 128>}, {pipeline_mode = #tpu.pipeline_mode<synchronous>, transform_indices = @transform_6, window_bounds = array<i64: 1, 128>}, {transform_indices = @transform_7, window_bounds = array<i64: 8, 128>}]} {
    %c0 = arith.constant 0 : index
    %c0_0 = arith.constant 0 : index
    %0 = vector.load %arg1[%c0, %c0_0] : memref<8x16xf32, #tpu.memory_space<vmem>>, vector<8x16xf32>
    %c0_1 = arith.constant 0 : index
    %c0_2 = arith.constant 0 : index
    %1 = vector.load %arg2[%c0_1, %c0_2] : memref<16x1280xf32, #tpu.memory_space<vmem>>, vector<16x1280xf32>
    %cst = arith.constant dense<0.000000e+00> : vector<8x1280xf32>
    %2 = tpu.matmul %0, %1, %cst {dimension_numbers = #tpu.dot_dimension_numbers<[1], [0], [0], [1], [0, 0, 1, 1], [], []>} : vector<8x16xf32>, vector<16x1280xf32>, vector<8x1280xf32> -> vector<8x1280xf32>
    %c0_3 = arith.constant 0 : index
    %c0_4 = arith.constant 0 : index
    %3 = vector.load %arg3[%c0_3, %c0_4] : memref<1x1280xf32, #tpu.memory_space<vmem>>, vector<1x1280xf32>
    %4 = vector.broadcast %3 : vector<1x1280xf32> to vector<8x1280xf32>
    %5 = arith.addf %2, %4 : vector<8x1280xf32>
    %cst_5 = arith.constant 0.000000e+00 : f32
    %6 = vector.broadcast %cst_5 : f32 to vector<8x1280xf32>
    %7 = arith.maximumf %5, %6 : vector<8x1280xf32>
    %8 = vector.extract_strided_slice %7 {offsets = [0, 0], sizes = [8, 256], strides = [1, 1]} : vector<8x1280xf32> to vector<8x256xf32>
    %c0_6 = arith.constant 0 : index
    %c0_7 = arith.constant 0 : index
    %c0_8 = arith.constant 0 : index
    %9 = vector.load %arg4[%c0_6, %c0_7, %c0_8] : memref<5x256x256xf32, #tpu.memory_space<vmem>>, vector<1x256x256xf32>
    %10 = vector.shape_cast %9 : vector<1x256x256xf32> to vector<256x256xf32>
    %cst_9 = arith.constant dense<0.000000e+00> : vector<8x256xf32>
    %11 = tpu.matmul %8, %10, %cst_9 {dimension_numbers = #tpu.dot_dimension_numbers<[1], [0], [0], [1], [0, 0, 1, 1], [], []>} : vector<8x256xf32>, vector<256x256xf32>, vector<8x256xf32> -> vector<8x256xf32>
    %c0_10 = arith.constant 0 : index
    %c0_11 = arith.constant 0 : index
    %c0_12 = arith.constant 0 : index
    %12 = vector.load %arg5[%c0_10, %c0_11, %c0_12] : memref<5x1x256xf32, #tpu.memory_space<vmem>>, vector<1x1x256xf32>
    %13 = vector.shape_cast %12 : vector<1x1x256xf32> to vector<1x256xf32>
    %14 = vector.broadcast %13 : vector<1x256xf32> to vector<8x256xf32>
    %15 = arith.addf %11, %14 : vector<8x256xf32>
    %cst_13 = arith.constant 0.000000e+00 : f32
    %16 = vector.broadcast %cst_13 : f32 to vector<8x256xf32>
    %17 = arith.maximumf %15, %16 : vector<8x256xf32>
    %18 = vector.extract_strided_slice %7 {offsets = [0, 256], sizes = [8, 256], strides = [1, 1]} : vector<8x1280xf32> to vector<8x256xf32>
    %c1 = arith.constant 1 : index
    %c0_14 = arith.constant 0 : index
    %c0_15 = arith.constant 0 : index
    %19 = vector.load %arg4[%c1, %c0_14, %c0_15] : memref<5x256x256xf32, #tpu.memory_space<vmem>>, vector<1x256x256xf32>
    %20 = vector.shape_cast %19 : vector<1x256x256xf32> to vector<256x256xf32>
    %cst_16 = arith.constant dense<0.000000e+00> : vector<8x256xf32>
    %21 = tpu.matmul %18, %20, %cst_16 {dimension_numbers = #tpu.dot_dimension_numbers<[1], [0], [0], [1], [0, 0, 1, 1], [], []>} : vector<8x256xf32>, vector<256x256xf32>, vector<8x256xf32> -> vector<8x256xf32>
    %c1_17 = arith.constant 1 : index
    %c0_18 = arith.constant 0 : index
    %c0_19 = arith.constant 0 : index
    %22 = vector.load %arg5[%c1_17, %c0_18, %c0_19] : memref<5x1x256xf32, #tpu.memory_space<vmem>>, vector<1x1x256xf32>
    %23 = vector.shape_cast %22 : vector<1x1x256xf32> to vector<1x256xf32>
    %24 = vector.broadcast %23 : vector<1x256xf32> to vector<8x256xf32>
    %25 = arith.addf %21, %24 : vector<8x256xf32>
    %cst_20 = arith.constant 0.000000e+00 : f32
    %26 = vector.broadcast %cst_20 : f32 to vector<8x256xf32>
    %27 = arith.maximumf %25, %26 : vector<8x256xf32>
    %28 = vector.extract_strided_slice %7 {offsets = [0, 512], sizes = [8, 256], strides = [1, 1]} : vector<8x1280xf32> to vector<8x256xf32>
    %c2 = arith.constant 2 : index
    %c0_21 = arith.constant 0 : index
    %c0_22 = arith.constant 0 : index
    %29 = vector.load %arg4[%c2, %c0_21, %c0_22] : memref<5x256x256xf32, #tpu.memory_space<vmem>>, vector<1x256x256xf32>
    %30 = vector.shape_cast %29 : vector<1x256x256xf32> to vector<256x256xf32>
    %cst_23 = arith.constant dense<0.000000e+00> : vector<8x256xf32>
    %31 = tpu.matmul %28, %30, %cst_23 {dimension_numbers = #tpu.dot_dimension_numbers<[1], [0], [0], [1], [0, 0, 1, 1], [], []>} : vector<8x256xf32>, vector<256x256xf32>, vector<8x256xf32> -> vector<8x256xf32>
    %c2_24 = arith.constant 2 : index
    %c0_25 = arith.constant 0 : index
    %c0_26 = arith.constant 0 : index
    %32 = vector.load %arg5[%c2_24, %c0_25, %c0_26] : memref<5x1x256xf32, #tpu.memory_space<vmem>>, vector<1x1x256xf32>
    %33 = vector.shape_cast %32 : vector<1x1x256xf32> to vector<1x256xf32>
    %34 = vector.broadcast %33 : vector<1x256xf32> to vector<8x256xf32>
    %35 = arith.addf %31, %34 : vector<8x256xf32>
    %cst_27 = arith.constant 0.000000e+00 : f32
    %36 = vector.broadcast %cst_27 : f32 to vector<8x256xf32>
    %37 = arith.maximumf %35, %36 : vector<8x256xf32>
    %38 = vector.extract_strided_slice %7 {offsets = [0, 768], sizes = [8, 256], strides = [1, 1]} : vector<8x1280xf32> to vector<8x256xf32>
    %c3 = arith.constant 3 : index
    %c0_28 = arith.constant 0 : index
    %c0_29 = arith.constant 0 : index
    %39 = vector.load %arg4[%c3, %c0_28, %c0_29] : memref<5x256x256xf32, #tpu.memory_space<vmem>>, vector<1x256x256xf32>
    %40 = vector.shape_cast %39 : vector<1x256x256xf32> to vector<256x256xf32>
    %cst_30 = arith.constant dense<0.000000e+00> : vector<8x256xf32>
    %41 = tpu.matmul %38, %40, %cst_30 {dimension_numbers = #tpu.dot_dimension_numbers<[1], [0], [0], [1], [0, 0, 1, 1], [], []>} : vector<8x256xf32>, vector<256x256xf32>, vector<8x256xf32> -> vector<8x256xf32>
    %c3_31 = arith.constant 3 : index
    %c0_32 = arith.constant 0 : index
    %c0_33 = arith.constant 0 : index
    %42 = vector.load %arg5[%c3_31, %c0_32, %c0_33] : memref<5x1x256xf32, #tpu.memory_space<vmem>>, vector<1x1x256xf32>
    %43 = vector.shape_cast %42 : vector<1x1x256xf32> to vector<1x256xf32>
    %44 = vector.broadcast %43 : vector<1x256xf32> to vector<8x256xf32>
    %45 = arith.addf %41, %44 : vector<8x256xf32>
    %cst_34 = arith.constant 0.000000e+00 : f32
    %46 = vector.broadcast %cst_34 : f32 to vector<8x256xf32>
    %47 = arith.maximumf %45, %46 : vector<8x256xf32>
    %48 = vector.extract_strided_slice %7 {offsets = [0, 1024], sizes = [8, 256], strides = [1, 1]} : vector<8x1280xf32> to vector<8x256xf32>
    %c4 = arith.constant 4 : index
    %c0_35 = arith.constant 0 : index
    %c0_36 = arith.constant 0 : index
    %49 = vector.load %arg4[%c4, %c0_35, %c0_36] : memref<5x256x256xf32, #tpu.memory_space<vmem>>, vector<1x256x256xf32>
    %50 = vector.shape_cast %49 : vector<1x256x256xf32> to vector<256x256xf32>
    %cst_37 = arith.constant dense<0.000000e+00> : vector<8x256xf32>
    %51 = tpu.matmul %48, %50, %cst_37 {dimension_numbers = #tpu.dot_dimension_numbers<[1], [0], [0], [1], [0, 0, 1, 1], [], []>} : vector<8x256xf32>, vector<256x256xf32>, vector<8x256xf32> -> vector<8x256xf32>
    %c4_38 = arith.constant 4 : index
    %c0_39 = arith.constant 0 : index
    %c0_40 = arith.constant 0 : index
    %52 = vector.load %arg5[%c4_38, %c0_39, %c0_40] : memref<5x1x256xf32, #tpu.memory_space<vmem>>, vector<1x1x256xf32>
    %53 = vector.shape_cast %52 : vector<1x1x256xf32> to vector<1x256xf32>
    %54 = vector.broadcast %53 : vector<1x256xf32> to vector<8x256xf32>
    %55 = arith.addf %51, %54 : vector<8x256xf32>
    %cst_41 = arith.constant 0.000000e+00 : f32
    %56 = vector.broadcast %cst_41 : f32 to vector<8x256xf32>
    %57 = arith.maximumf %55, %56 : vector<8x256xf32>
    %58 = tpu.concatenate %17, %27, %37, %47, %57 in 1 : vector<8x256xf32>, vector<8x256xf32>, vector<8x256xf32>, vector<8x256xf32>, vector<8x256xf32> -> vector<8x1280xf32>
    %c0_42 = arith.constant 0 : index
    %c0_43 = arith.constant 0 : index
    %59 = vector.load %arg6[%c0_42, %c0_43] : memref<1280x128xf32, #tpu.memory_space<vmem>>, vector<1280x128xf32>
    %cst_44 = arith.constant dense<0.000000e+00> : vector<8x128xf32>
    %60 = tpu.matmul %58, %59, %cst_44 {dimension_numbers = #tpu.dot_dimension_numbers<[1], [0], [0], [1], [0, 0, 1, 1], [], []>} : vector<8x1280xf32>, vector<1280x128xf32>, vector<8x128xf32> -> vector<8x128xf32>
    %c0_45 = arith.constant 0 : index
    %c0_46 = arith.constant 0 : index
    %61 = vector.load %arg7[%c0_45, %c0_46] : memref<1x128xf32, #tpu.memory_space<vmem>>, vector<1x128xf32>
    %62 = vector.broadcast %61 : vector<1x128xf32> to vector<8x128xf32>
    %63 = arith.addf %60, %62 : vector<8x128xf32>
    %c0_47 = arith.constant 0 : index
    %c0_48 = arith.constant 0 : index
    %64 = vector.load %arg8[%c0_47, %c0_48] : memref<8x128xf32, #tpu.memory_space<vmem>>, vector<8x128xf32>
    tpu.vector_store %arg8[%c0_47, %c0_48], %63 {strides = array<i32>} : memref<8x128xf32, #tpu.memory_space<vmem>>, vector<8x128xf32>,
    return
  }
  func.func @transform_0(%arg0: i32) -> (i32, i32) {
    %c0_i32 = arith.constant 0 : i32
    %c0_i32_0 = arith.constant 0 : i32
    return %arg0, %c0_i32 : i32, i32
  }
  func.func @transform_1(%arg0: i32) -> (i32, i32) {
    %c0_i32 = arith.constant 0 : i32
    %c0_i32_0 = arith.constant 0 : i32
    %c0_i32_1 = arith.constant 0 : i32
    return %c0_i32, %c0_i32_0 : i32, i32
  }
  func.func @transform_2(%arg0: i32) -> (i32, i32) {
    %c0_i32 = arith.constant 0 : i32
    %c0_i32_0 = arith.constant 0 : i32
    %c0_i32_1 = arith.constant 0 : i32
    return %c0_i32, %c0_i32_0 : i32, i32
  }
  func.func @transform_3(%arg0: i32) -> (i32, i32, i32) {
    %c0_i32 = arith.constant 0 : i32
    %c0_i32_0 = arith.constant 0 : i32
    %c0_i32_1 = arith.constant 0 : i32
    %c0_i32_2 = arith.constant 0 : i32
    return %c0_i32, %c0_i32_0, %c0_i32_1 : i32, i32, i32
  }
  func.func @transform_4(%arg0: i32) -> (i32, i32, i32) {
    %c0_i32 = arith.constant 0 : i32
    %c0_i32_0 = arith.constant 0 : i32
    %c0_i32_1 = arith.constant 0 : i32
    %c0_i32_2 = arith.constant 0 : i32
    return %c0_i32, %c0_i32_0, %c0_i32_1 : i32, i32, i32
  }
  func.func @transform_5(%arg0: i32) -> (i32, i32) {
    %c0_i32 = arith.constant 0 : i32
    %c0_i32_0 = arith.constant 0 : i32
    %c0_i32_1 = arith.constant 0 : i32
    return %c0_i32, %c0_i32_0 : i32, i32
  }
  func.func @transform_6(%arg0: i32) -> (i32, i32) {
    %c0_i32 = arith.constant 0 : i32
    %c0_i32_0 = arith.constant 0 : i32
    %c0_i32_1 = arith.constant 0 : i32
    return %c0_i32, %c0_i32_0 : i32, i32
  }
  func.func @transform_7(%arg0: i32) -> (i32, i32) {
    %c0_i32 = arith.constant 0 : i32
    %c0_i32_0 = arith.constant 0 : i32
    return %arg0, %c0_i32 : i32, i32
  }
}

</mosaic_0001>

<llo_original>
// kernel: tpu_custom_call.1
$region0: #{tpu_custom_call.1}
  #allocation0 [shape = 'u32[]', space=smem, size = 0x4, offset = 0x4, fixed_abs, tag = 'smem constant byte address 0x4 - core index']
  #allocation1 [shape = 'u32[144,128]{1,0:T(1,128)}', space=vmem, size = 0x12000, scoped, tag = 'internal scratch']
  %s0 = inlined_call_operand.hbm [shape: f32[8,16], index: 0, kind: input, shape index: {}]
  %s1 = inlined_call_operand.hbm [shape: f32[16,1280], index: 1, kind: input, shape index: {}]
  %s2 = inlined_call_operand.hbm [shape: f32[1,1280], index: 2, kind: input, shape index: {}]
  %s3 = inlined_call_operand.hbm [shape: f32[5,256,256], index: 3, kind: input, shape index: {}]
  %s4 = inlined_call_operand.hbm [shape: f32[5,1,256], index: 4, kind: input, shape index: {}]
  %s5 = inlined_call_operand.hbm [shape: f32[1280,128], index: 5, kind: input, shape index: {}]
  %s6 = inlined_call_operand.hbm [shape: f32[1,128], index: 6, kind: input, shape index: {}]
  %s7 = inlined_call_operand.hbm [shape: f32[8,128], index: 7, kind: output, shape index: {}]
  %s8 = sld [smem:[#allocation0]]
  $region66: #{tpu_custom_call.1} parent=0
    _
  %s10 = ssub.s32 1, %s8
  %s11 = scalar_select 0, %s10, %s8
  $region1: #{tpu_custom_call.1} parent=0
    #allocation2 [shape = 'u8[4096]{0}', space=vmem, size = 0x1000, scoped, tag = 'input window, operand 0, single buffered']
    #allocation3 [shape = 's32[1]{0}', space=sflag, size = 0x4, scoped, tag = 'scoped memory for tpu_custom_call.1']
    #allocation4 [shape = 's32[1]{0}', space=sflag, size = 0x4, scoped, tag = 'scoped memory for tpu_custom_call.1']
    #allocation5 [shape = 'u8[81920]{0}', space=vmem, size = 0x14000, scoped, tag = 'input window, operand 1, single buffered']
    #allocation6 [shape = 's32[1]{0}', space=sflag, size = 0x4, scoped, tag = 'scoped memory for tpu_custom_call.1']
    #allocation7 [shape = 'u8[5120]{0}', space=vmem, size = 0x1400, scoped, tag = 'input window, operand 2, single buffered']
    #allocation8 [shape = 'u8[1310720]{0}', space=vmem, size = 0x140000, scoped, tag = 'input window, operand 3, single buffered']
    #allocation9 [shape = 's32[1]{0}', space=sflag, size = 0x4, scoped, tag = 'scoped memory for tpu_custom_call.1']
    #allocation10 [shape = 'u8[5120]{0}', space=vmem, size = 0x1400, scoped, tag = 'input window, operand 4, single buffered']
    #allocation11 [shape = 'u8[655360]{0}', space=vmem, size = 0xa0000, scoped, tag = 'input window, operand 5, single buffered']
    #allocation12 [shape = 's32[1]{0}', space=sflag, size = 0x4, scoped, tag = 'scoped memory for tpu_custom_call.1']
    #allocation13 [shape = 'u8[512]{0}', space=vmem, size = 0x400, scoped, tag = 'input window, operand 6, single buffered']
    #allocation14 [shape = 'u8[4096]{0}', space=vmem, size = 0x1000, scoped, tag = 'output window, operand 0, single buffered']
    %12 = vsyncpa [#allocation3], 0
    %13 = vsyncpa [#allocation6], 0
    %14 = vsyncpa [#allocation9], 0
    %15 = vsyncpa [#allocation12], 0
    %16 = vsyncpa [#allocation4], 0
    // Predicated region
    $region2: #{tpu_custom_call.1} parent=1 // pred_check
      _
    $region3: #{tpu_custom_call.1} parent=1 // pred_check_branch
      %18 = sbr.rel (0) target = $region5
    $region4: #{tpu_custom_call.1} parent=1 // pred_region
      %s20 = ssub.s32 128, 128
      %21 = vsyncadd [#allocation3], %s20
      %s23 = sshll.u32 [#allocation2], 4
      %s24 = int_to_ptr.vmem [resolvable:$true] %s23
      %26 = dma.hbm_to_vmem [thread:$0]  %s0, 128, %s24, [#allocation3]
    $region5: #{tpu_custom_call.1} parent=1 // pred_fallthru
      _
    // Predicated region
    $region6: #{tpu_custom_call.1} parent=1 // pred_check
      _
    $region7: #{tpu_custom_call.1} parent=1 // pred_check_branch
      %28 = sbr.rel (0) target = $region9
    $region8: #{tpu_custom_call.1} parent=1 // pred_region
      %s30 = ssub.s32 2560, 2560
      %31 = vsyncadd [#allocation6], %s30
      %s32 = sshll.u32 [#allocation5], 4
      %s33 = int_to_ptr.vmem [resolvable:$true] %s32
      %38 = dma.hbm_to_vmem [thread:$0]  %s1, 2560, %s33, [#allocation6], 1280, 1280, 80
    $region9: #{tpu_custom_call.1} parent=1 // pred_fallthru
      _
    // Predicated region
    $region10: #{tpu_custom_call.1} parent=1 // pred_check
      _
    $region11: #{tpu_custom_call.1} parent=1 // pred_check_branch
      %40 = sbr.rel (0) target = $region13
    $region12: #{tpu_custom_call.1} parent=1 // pred_region
      %s42 = ssub.s32 160, 160
      %43 = vsyncadd [#allocation6], %s42
      %s45 = sshll.u32 [#allocation7], 4
      %s46 = int_to_ptr.vmem [resolvable:$true] %s45
      %48 = dma.hbm_to_vmem [thread:$0]  %s2, 160, %s46, [#allocation6]
    $region13: #{tpu_custom_call.1} parent=1 // pred_fallthru
      _
    // Predicated region
    $region14: #{tpu_custom_call.1} parent=1 // pred_check
      _
    $region15: #{tpu_custom_call.1} parent=1 // pred_check_branch
      %50 = sbr.rel (0) target = $region17
    $region16: #{tpu_custom_call.1} parent=1 // pred_region
      %s52 = ssub.s32 40960, 40960
      %53 = vsyncadd [#allocation9], %s52
      %s54 = sshll.u32 [#allocation8], 4
      %s55 = int_to_ptr.vmem [resolvable:$true] %s54
      %60 = dma.hbm_to_vmem [thread:$0]  %s3, 40960, %s55, [#allocation9], 256, 256, 16
    $region17: #{tpu_custom_call.1} parent=1 // pred_fallthru
      _
    // Predicated region
    $region18: #{tpu_custom_call.1} parent=1 // pred_check
      _
    $region19: #{tpu_custom_call.1} parent=1 // pred_check_branch
      %62 = sbr.rel (0) target = $region21
    $region20: #{tpu_custom_call.1} parent=1 // pred_region
      %s64 = ssub.s32 160, 160
      %65 = vsyncadd [#allocation9], %s64
      %s66 = sshll.u32 [#allocation10], 4
      %s67 = int_to_ptr.vmem [resolvable:$true] %s66
      %72 = dma.hbm_to_vmem [thread:$0]  %s4, 160, %s67, [#allocation9], 32, 32, 2
    $region21: #{tpu_custom_call.1} parent=1 // pred_fallthru
      _
    // Predicated region
    $region22: #{tpu_custom_call.1} parent=1 // pred_check
      _
    $region23: #{tpu_custom_call.1} parent=1 // pred_check_branch
      %74 = sbr.rel (0) target = $region25
    $region24: #{tpu_custom_call.1} parent=1 // pred_region
      %s76 = ssub.s32 20480, 20480
      %77 = vsyncadd [#allocation12], %s76
      %s78 = sshll.u32 [#allocation11], 4
      %s79 = int_to_ptr.vmem [resolvable:$true] %s78
      %84 = dma.hbm_to_vmem [thread:$0]  %s5, 20480, %s79, [#allocation12], 128, 128, 8
    $region25: #{tpu_custom_call.1} parent=1 // pred_fallthru
      _
    // Predicated region
    $region26: #{tpu_custom_call.1} parent=1 // pred_check
      _
    $region27: #{tpu_custom_call.1} parent=1 // pred_check_branch
      %86 = sbr.rel (0) target = $region29
    $region28: #{tpu_custom_call.1} parent=1 // pred_region
      %s88 = ssub.s32 16, 16
      %89 = vsyncadd [#allocation12], %s88
      %s91 = sshll.u32 [#allocation13], 4
      %s92 = int_to_ptr.vmem [resolvable:$true] %s91
      %94 = dma.hbm_to_vmem [thread:$0]  %s6, 16, %s92, [#allocation12]
    $region29: #{tpu_custom_call.1} parent=1 // pred_fallthru
      _
    // Predicated region
    $region30: #{tpu_custom_call.1} parent=1 // pred_check
      _
    $region31: #{tpu_custom_call.1} parent=1 // pred_check_branch
      %96 = sbr.rel (0) target = $region33
    $region32: #{tpu_custom_call.1} parent=1 // pred_region
      %97 = dma.done [#allocation3], 128
    $region33: #{tpu_custom_call.1} parent=1 // pred_fallthru
      _
    // Predicated region
    $region34: #{tpu_custom_call.1} parent=1 // pred_check
      _
    $region35: #{tpu_custom_call.1} parent=1 // pred_check_branch
      %99 = sbr.rel (0) target = $region37
    $region36: #{tpu_custom_call.1} parent=1 // pred_region
      %100 = dma.done [#allocation6], 2560
    $region37: #{tpu_custom_call.1} parent=1 // pred_fallthru
      _
    // Predicated region
    $region38: #{tpu_custom_call.1} parent=1 // pred_check
      _
    $region39: #{tpu_custom_call.1} parent=1 // pred_check_branch
      %102 = sbr.rel (0) target = $region41
    $region40: #{tpu_custom_call.1} parent=1 // pred_region
      %103 = dma.done [#allocation6], 160
    $region41: #{tpu_custom_call.1} parent=1 // pred_fallthru
      _
    // Predicated region
    $region42: #{tpu_custom_call.1} parent=1 // pred_check
      _
    $region43: #{tpu_custom_call.1} parent=1 // pred_check_branch
      %105 = sbr.rel (0) target = $region45
    $region44: #{tpu_custom_call.1} parent=1 // pred_region
      %106 = dma.done [#allocation9], 40960
    $region45: #{tpu_custom_call.1} parent=1 // pred_fallthru
      _
    // Predicated region
    $region46: #{tpu_custom_call.1} parent=1 // pred_check
      _
    $region47: #{tpu_custom_call.1} parent=1 // pred_check_branch
      %108 = sbr.rel (0) target = $region49
    $region48: #{tpu_custom_call.1} parent=1 // pred_region
      %109 = dma.done [#allocation9], 160
    $region49: #{tpu_custom_call.1} parent=1 // pred_fallthru
      _
    // Predicated region
    $region50: #{tpu_custom_call.1} parent=1 // pred_check
      _
    $region51: #{tpu_custom_call.1} parent=1 // pred_check_branch
      %111 = sbr.rel (0) target = $region53
    $region52: #{tpu_custom_call.1} parent=1 // pred_region
      %112 = dma.done [#allocation12], 20480
    $region53: #{tpu_custom_call.1} parent=1 // pred_fallthru
      _
    // Predicated region
    $region54: #{tpu_custom_call.1} parent=1 // pred_check
      _
    $region55: #{tpu_custom_call.1} parent=1 // pred_check_branch
      %114 = sbr.rel (0) target = $region57
    $region56: #{tpu_custom_call.1} parent=1 // pred_region
      %115 = dma.done [#allocation12], 16
    $region57: #{tpu_custom_call.1} parent=1 // pred_fallthru
      _
    %v116 = vld [vmem:[#allocation2] sm:$0xff]
    %v117 = vld [vmem:[#allocation5] sm:$0xff]
    %v118 = vld [vmem:[#allocation5 + $0x8] sm:$0xff]
    %v119 = vld [vmem:[#allocation5 + $0x10] sm:$0xff]
    %v120 = vld [vmem:[#allocation5 + $0x18] sm:$0xff]
    %v121 = vld [vmem:[#allocation5 + $0x20] sm:$0xff]
    %v122 = vld [vmem:[#allocation5 + $0x28] sm:$0xff]
    %v123 = vld [vmem:[#allocation5 + $0x30] sm:$0xff]
    %v124 = vld [vmem:[#allocation5 + $0x38] sm:$0xff]
    %v125 = vld [vmem:[#allocation5 + $0x40] sm:$0xff]
    %v126 = vld [vmem:[#allocation5 + $0x48] sm:$0xff]
    %v127 = vld [vmem:[#allocation5 + $0x50] sm:$0xff]
    %v128 = vld [vmem:[#allocation5 + $0x58] sm:$0xff]
    %v129 = vld [vmem:[#allocation5 + $0x60] sm:$0xff]
    %v130 = vld [vmem:[#allocation5 + $0x68] sm:$0xff]
    %v131 = vld [vmem:[#allocation5 + $0x70] sm:$0xff]
    %v132 = vld [vmem:[#allocation5 + $0x78] sm:$0xff]
    %v133 = vld [vmem:[#allocation5 + $0x80] sm:$0xff]
    %v134 = vld [vmem:[#allocation5 + $0x88] sm:$0xff]
    %v135 = vld [vmem:[#allocation5 + $0x90] sm:$0xff]
    %v136 = vld [vmem:[#allocation5 + $0x98] sm:$0xff]
    %v137 = vld [vmem:[#allocation7] sm:$0xff]
    %v138 = vld [vmem:[#allocation7 + $0x8] sm:$0x3]
    %v141 = vlaneseq
    %v142 = vshrl.u32 %v141, 7
    %v143 = vsub.s32 0, %v142
    %v144 = vrot.slane %v137, %v143
    %v145 = vlaneseq
    %v146 = vshrl.u32 %v145, 7
    %v147 = vsub.s32 1, %v146
    %v148 = vrot.slane %v137, %v147
    %v149 = vlaneseq
    %v150 = vshrl.u32 %v149, 7
    %v151 = vsub.s32 2, %v150
    %v152 = vrot.slane %v137, %v151
    %v153 = vlaneseq
    %v154 = vshrl.u32 %v153, 7
    %v155 = vsub.s32 3, %v154
    %v156 = vrot.slane %v137, %v155
    %v157 = vlaneseq
    %v158 = vshrl.u32 %v157, 7
    %v159 = vsub.s32 4, %v158
    %v160 = vrot.slane %v137, %v159
    %v161 = vlaneseq
    %v162 = vshrl.u32 %v161, 7
    %v163 = vsub.s32 5, %v162
    %v164 = vrot.slane %v137, %v163
    %v165 = vlaneseq
    %v166 = vshrl.u32 %v165, 7
    %v167 = vsub.s32 6, %v166
    %v168 = vrot.slane %v137, %v167
    %v169 = vlaneseq
    %v170 = vshrl.u32 %v169, 7
    %v171 = vsub.s32 7, %v170
    %v172 = vrot.slane %v137, %v171
    %v173 = vlaneseq
    %v174 = vshrl.u32 %v173, 7
    %v175 = vsub.s32 0, %v174
    %v176 = vrot.slane %v138, %v175
    %v177 = vlaneseq
    %v178 = vshrl.u32 %v177, 7
    %v179 = vsub.s32 1, %v178
    %v180 = vrot.slane %v138, %v179
    %vm191 = vcmask 130048
    %v193 = vsel %vm191, %v116, 0
    %195 = vmatprep.subr.mxu0 %v118
    %196 = vmatpush1.msra.mxu0 %v117
    %197 = vmatprep.subr.mxu0 %v128
    %198 = vmatpush1.msra.mxu0 %v127
    %199 = vmatprep.subr.mxu0 0.0
    %200 = vmatpush1.msra.mxu0 0.0
    %201 = vmatprep.subr.mxu0 0.0
    %202 = vmatpush1.msra.mxu0 0.0
    %203 = vmatprep.subr.mxu0 0.0
    %204 = vmatpush1.msra.mxu0 0.0
    %205 = vmatprep.subr.mxu0 0.0
    %206 = vmatpush1.msra.mxu0 0.0
    %207 = vmatprep.subr.mxu0 0.0
    %208 = vmatpush1.msra.mxu0 0.0
    %209 = vmatprep.subr.mxu0 0.0
    %210 = vmatpush1.msra.mxu0 0.0
    %211 = vmatprep.subr.mxu0 0.0
    %212 = vmatpush1.msra.mxu0 0.0
    %213 = vmatprep.subr.mxu0 0.0
    %214 = vmatpush1.msra.mxu0 0.0
    %215 = vmatprep.subr.mxu0 0.0
    %216 = vmatpush1.msra.mxu0 0.0
    %217 = vmatprep.subr.mxu0 0.0
    %218 = vmatpush1.msra.mxu0 0.0
    %219 = vmatprep.subr.mxu0 0.0
    %220 = vmatpush1.msra.mxu0 0.0
    %221 = vmatprep.subr.mxu0 0.0
    %222 = vmatpush1.msra.mxu0 0.0
    %223 = vmatprep.subr.mxu0 0.0
    %224 = vmatpush1.msra.mxu0 0.0
    %225 = vmatprep.subr.mxu0 0.0
    %226 = vmatpush1.msra.mxu0 0.0
    %227 = vmatprep.subr.mxu0 0.0
    %228 = vmatpush1.msra.mxu0 0.0
    %229 = vmatprep.subr.mxu0 0.0
    %230 = vmatpush1.msra.mxu0 0.0
    %231 = vmatprep.subr.mxu0 0.0
    %232 = vmatpush1.msra.mxu0 0.0
    %233 = vmatprep.subr.mxu0 0.0
    %234 = vmatpush1.msra.mxu0 0.0
    %235 = vmatprep.subr.mxu0 0.0
    %236 = vmatpush1.msra.mxu0 0.0
    %237 = vmatprep.subr.mxu0 0.0
    %238 = vmatpush1.msra.mxu0 0.0
    %239 = vmatprep.subr.mxu0 0.0
    %240 = vmatpush1.msra.mxu0 0.0
    %241 = vmatprep.subr.mxu0 0.0
    %242 = vmatpush1.msra.mxu0 0.0
    %243 = vmatprep.subr.mxu0 0.0
    %244 = vmatpush1.msra.mxu0 0.0
    %245 = vmatprep.subr.mxu0 0.0
    %246 = vmatpush1.msra.mxu0 0.0
    %247 = vmatprep.subr.mxu0 0.0
    %248 = vmatpush1.msra.mxu0 0.0
    %249 = vmatprep.subr.mxu0 0.0
    %250 = vmatpush1.msra.mxu0 0.0
    %251 = vmatprep.subr.mxu0 0.0
    %252 = vmatpush1.msra.mxu0 0.0
    %253 = vmatprep.subr.mxu0 0.0
    %254 = vmatpush1.msra.mxu0 0.0
    %255 = vmatprep.subr.mxu0 0.0
    %256 = vmatpush1.msra.mxu0 0.0
    %257 = vmatprep.subr.mxu0 0.0
    %258 = vmatpush1.msra.mxu0 0.0
    %259 = vmatprep.mubr.f32.mxu0 0.0
    %260 = vmatmul.mubr.f32.gmra.mrb[0].mxu0 %v193
    %v261 = vpop.f32.mrb[0].mxu0
    %v262 = vadd.f32 %v144, %v261
    %v263 = vpop.f32.mrb[0].mxu0
    %v264 = vadd.f32 %v148, %v263
    %265 = vdwg.mxu0
    %266 = vmatprep.subr.mxu0 %v120
    %267 = vmatpush1.msra.mxu0 %v119
    %268 = vmatprep.subr.mxu0 %v130
    %269 = vmatpush1.msra.mxu0 %v129
    %270 = vmatprep.subr.mxu0 0.0
    %271 = vmatpush1.msra.mxu0 0.0
    %272 = vmatprep.subr.mxu0 0.0
    %273 = vmatpush1.msra.mxu0 0.0
    %274 = vmatprep.subr.mxu0 0.0
    %275 = vmatpush1.msra.mxu0 0.0
    %276 = vmatprep.subr.mxu0 0.0
    %277 = vmatpush1.msra.mxu0 0.0
    %278 = vmatprep.subr.mxu0 0.0
    %279 = vmatpush1.msra.mxu0 0.0
    %280 = vmatprep.subr.mxu0 0.0
    %281 = vmatpush1.msra.mxu0 0.0
    %282 = vmatprep.subr.mxu0 0.0
    %283 = vmatpush1.msra.mxu0 0.0
    %284 = vmatprep.subr.mxu0 0.0
    %285 = vmatpush1.msra.mxu0 0.0
    %286 = vmatprep.subr.mxu0 0.0
    %287 = vmatpush1.msra.mxu0 0.0
    %288 = vmatprep.subr.mxu0 0.0
    %289 = vmatpush1.msra.mxu0 0.0
    %290 = vmatprep.subr.mxu0 0.0
    %291 = vmatpush1.msra.mxu0 0.0
    %292 = vmatprep.subr.mxu0 0.0
    %293 = vmatpush1.msra.mxu0 0.0
    %294 = vmatprep.subr.mxu0 0.0
    %295 = vmatpush1.msra.mxu0 0.0
    %296 = vmatprep.subr.mxu0 0.0
    %297 = vmatpush1.msra.mxu0 0.0
    %298 = vmatprep.subr.mxu0 0.0
    %299 = vmatpush1.msra.mxu0 0.0
    %300 = vmatprep.subr.mxu0 0.0
    %301 = vmatpush1.msra.mxu0 0.0
    %302 = vmatprep.subr.mxu0 0.0
    %303 = vmatpush1.msra.mxu0 0.0
    %304 = vmatprep.subr.mxu0 0.0
    %305 = vmatpush1.msra.mxu0 0.0
    %306 = vmatprep.subr.mxu0 0.0
    %307 = vmatpush1.msra.mxu0 0.0
    %308 = vmatprep.subr.mxu0 0.0
    %309 = vmatpush1.msra.mxu0 0.0
    %310 = vmatprep.subr.mxu0 0.0
    %311 = vmatpush1.msra.mxu0 0.0
    %312 = vmatprep.subr.mxu0 0.0
    %313 = vmatpush1.msra.mxu0 0.0
    %314 = vmatprep.subr.mxu0 0.0
    %315 = vmatpush1.msra.mxu0 0.0
    %316 = vmatprep.subr.mxu0 0.0
    %317 = vmatpush1.msra.mxu0 0.0
    %318 = vmatprep.subr.mxu0 0.0
    %319 = vmatpush1.msra.mxu0 0.0
    %320 = vmatprep.subr.mxu0 0.0
    %321 = vmatpush1.msra.mxu0 0.0
    %322 = vmatprep.subr.mxu0 0.0
    %323 = vmatpush1.msra.mxu0 0.0
    %324 = vmatprep.subr.mxu0 0.0
    %325 = vmatpush1.msra.mxu0 0.0
    %326 = vmatprep.subr.mxu0 0.0
    %327 = vmatpush1.msra.mxu0 0.0
    %328 = vmatprep.subr.mxu0 0.0
    %329 = vmatpush1.msra.mxu0 0.0
    %330 = vmatprep.mubr.f32.mxu0 0.0
    %331 = vmatmul.mubr.f32.gmra.mrb[0].mxu0 %v193
    %v332 = vpop.f32.mrb[0].mxu0
    %v333 = vadd.f32 %v152, %v332
    %v334 = vpop.f32.mrb[0].mxu0
    %v335 = vadd.f32 %v156, %v334
    %336 = vdwg.mxu0
    %337 = vmatprep.subr.mxu0 %v122
    %338 = vmatpush1.msra.mxu0 %v121
    %339 = vmatprep.subr.mxu0 %v132
    %340 = vmatpush1.msra.mxu0 %v131
    %341 = vmatprep.subr.mxu0 0.0
    %342 = vmatpush1.msra.mxu0 0.0
    %343 = vmatprep.subr.mxu0 0.0
    %344 = vmatpush1.msra.mxu0 0.0
    %345 = vmatprep.subr.mxu0 0.0
    %346 = vmatpush1.msra.mxu0 0.0
    %347 = vmatprep.subr.mxu0 0.0
    %348 = vmatpush1.msra.mxu0 0.0
    %349 = vmatprep.subr.mxu0 0.0
    %350 = vmatpush1.msra.mxu0 0.0
    %351 = vmatprep.subr.mxu0 0.0
    %352 = vmatpush1.msra.mxu0 0.0
    %353 = vmatprep.subr.mxu0 0.0
    %354 = vmatpush1.msra.mxu0 0.0
    %355 = vmatprep.subr.mxu0 0.0
    %356 = vmatpush1.msra.mxu0 0.0
    %357 = vmatprep.subr.mxu0 0.0
    %358 = vmatpush1.msra.mxu0 0.0
    %359 = vmatprep.subr.mxu0 0.0
    %360 = vmatpush1.msra.mxu0 0.0
    %361 = vmatprep.subr.mxu0 0.0
    %362 = vmatpush1.msra.mxu0 0.0
    %363 = vmatprep.subr.mxu0 0.0
    %364 = vmatpush1.msra.mxu0 0.0
    %365 = vmatprep.subr.mxu0 0.0
    %366 = vmatpush1.msra.mxu0 0.0
    %367 = vmatprep.subr.mxu0 0.0
    %368 = vmatpush1.msra.mxu0 0.0
    %369 = vmatprep.subr.mxu0 0.0
    %370 = vmatpush1.msra.mxu0 0.0
    %371 = vmatprep.subr.mxu0 0.0
    %372 = vmatpush1.msra.mxu0 0.0
    %373 = vmatprep.subr.mxu0 0.0
    %374 = vmatpush1.msra.mxu0 0.0
    %375 = vmatprep.subr.mxu0 0.0
    %376 = vmatpush1.msra.mxu0 0.0
    %377 = vmatprep.subr.mxu0 0.0
    %378 = vmatpush1.msra.mxu0 0.0
    %379 = vmatprep.subr.mxu0 0.0
    %380 = vmatpush1.msra.mxu0 0.0
    %381 = vmatprep.subr.mxu0 0.0
    %382 = vmatpush1.msra.mxu0 0.0
    %383 = vmatprep.subr.mxu0 0.0
    %384 = vmatpush1.msra.mxu0 0.0
    %385 = vmatprep.subr.mxu0 0.0
    %386 = vmatpush1.msra.mxu0 0.0
    %387 = vmatprep.subr.mxu0 0.0
    %388 = vmatpush1.msra.mxu0 0.0
    %389 = vmatprep.subr.mxu0 0.0
    %390 = vmatpush1.msra.mxu0 0.0
    %391 = vmatprep.subr.mxu0 0.0
    %392 = vmatpush1.msra.mxu0 0.0
    %393 = vmatprep.subr.mxu0 0.0
    %394 = vmatpush1.msra.mxu0 0.0
    %395 = vmatprep.subr.mxu0 0.0
    %396 = vmatpush1.msra.mxu0 0.0
    %397 = vmatprep.subr.mxu0 0.0
    %398 = vmatpush1.msra.mxu0 0.0
    %399 = vmatprep.subr.mxu0 0.0
    %400 = vmatpush1.msra.mxu0 0.0
    %401 = vmatprep.mubr.f32.mxu0 0.0
    %402 = vmatmul.mubr.f32.gmra.mrb[0].mxu0 %v193
    %v403 = vpop.f32.mrb[0].mxu0
    %v404 = vadd.f32 %v160, %v403
    %v405 = vpop.f32.mrb[0].mxu0
    %v406 = vadd.f32 %v164, %v405
    %407 = vdwg.mxu0
    %408 = vmatprep.subr.mxu0 %v124
    %409 = vmatpush1.msra.mxu0 %v123
    %410 = vmatprep.subr.mxu0 %v134
    %411 = vmatpush1.msra.mxu0 %v133
    %412 = vmatprep.subr.mxu0 0.0
    %413 = vmatpush1.msra.mxu0 0.0
    %414 = vmatprep.subr.mxu0 0.0
    %415 = vmatpush1.msra.mxu0 0.0
    %416 = vmatprep.subr.mxu0 0.0
    %417 = vmatpush1.msra.mxu0 0.0
    %418 = vmatprep.subr.mxu0 0.0
    %419 = vmatpush1.msra.mxu0 0.0
    %420 = vmatprep.subr.mxu0 0.0
    %421 = vmatpush1.msra.mxu0 0.0
    %422 = vmatprep.subr.mxu0 0.0
    %423 = vmatpush1.msra.mxu0 0.0
    %424 = vmatprep.subr.mxu0 0.0
    %425 = vmatpush1.msra.mxu0 0.0
    %426 = vmatprep.subr.mxu0 0.0
    %427 = vmatpush1.msra.mxu0 0.0
    %428 = vmatprep.subr.mxu0 0.0
    %429 = vmatpush1.msra.mxu0 0.0
    %430 = vmatprep.subr.mxu0 0.0
    %431 = vmatpush1.msra.mxu0 0.0
    %432 = vmatprep.subr.mxu0 0.0
    %433 = vmatpush1.msra.mxu0 0.0
    %434 = vmatprep.subr.mxu0 0.0
    %435 = vmatpush1.msra.mxu0 0.0
    %436 = vmatprep.subr.mxu0 0.0
    %437 = vmatpush1.msra.mxu0 0.0
    %438 = vmatprep.subr.mxu0 0.0
    %439 = vmatpush1.msra.mxu0 0.0
    %440 = vmatprep.subr.mxu0 0.0
    %441 = vmatpush1.msra.mxu0 0.0
    %442 = vmatprep.subr.mxu0 0.0
    %443 = vmatpush1.msra.mxu0 0.0
    %444 = vmatprep.subr.mxu0 0.0
    %445 = vmatpush1.msra.mxu0 0.0
    %446 = vmatprep.subr.mxu0 0.0
    %447 = vmatpush1.msra.mxu0 0.0
    %448 = vmatprep.subr.mxu0 0.0
    %449 = vmatpush1.msra.mxu0 0.0
    %450 = vmatprep.subr.mxu0 0.0
    %451 = vmatpush1.msra.mxu0 0.0
    %452 = vmatprep.subr.mxu0 0.0
    %453 = vmatpush1.msra.mxu0 0.0
    %454 = vmatprep.subr.mxu0 0.0
    %455 = vmatpush1.msra.mxu0 0.0
    %456 = vmatprep.subr.mxu0 0.0
    %457 = vmatpush1.msra.mxu0 0.0
    %458 = vmatprep.subr.mxu0 0.0
    %459 = vmatpush1.msra.mxu0 0.0
    %460 = vmatprep.subr.mxu0 0.0
    %461 = vmatpush1.msra.mxu0 0.0
    %462 = vmatprep.subr.mxu0 0.0
    %463 = vmatpush1.msra.mxu0 0.0
    %464 = vmatprep.subr.mxu0 0.0
    %465 = vmatpush1.msra.mxu0 0.0
    %466 = vmatprep.subr.mxu0 0.0
    %467 = vmatpush1.msra.mxu0 0.0
    %468 = vmatprep.subr.mxu0 0.0
    %469 = vmatpush1.msra.mxu0 0.0
    %470 = vmatprep.subr.mxu0 0.0
    %471 = vmatpush1.msra.mxu0 0.0
    %472 = vmatprep.mubr.f32.mxu0 0.0
    %473 = vmatmul.mubr.f32.gmra.mrb[0].mxu0 %v193
    %v474 = vpop.f32.mrb[0].mxu0
    %v475 = vadd.f32 %v168, %v474
    %v476 = vpop.f32.mrb[0].mxu0
    %v477 = vadd.f32 %v172, %v476
    %478 = vdwg.mxu0
    %479 = vmatprep.subr.mxu0 %v126
    %480 = vmatpush1.msra.mxu0 %v125
    %481 = vmatprep.subr.mxu0 %v136
    %482 = vmatpush1.msra.mxu0 %v135
    %483 = vmatprep.subr.mxu0 0.0
    %484 = vmatpush1.msra.mxu0 0.0
    %485 = vmatprep.subr.mxu0 0.0
    %486 = vmatpush1.msra.mxu0 0.0
    %487 = vmatprep.subr.mxu0 0.0
    %488 = vmatpush1.msra.mxu0 0.0
    %489 = vmatprep.subr.mxu0 0.0
    %490 = vmatpush1.msra.mxu0 0.0
    %491 = vmatprep.subr.mxu0 0.0
    %492 = vmatpush1.msra.mxu0 0.0
    %493 = vmatprep.subr.mxu0 0.0
    %494 = vmatpush1.msra.mxu0 0.0
    %495 = vmatprep.subr.mxu0 0.0
    %496 = vmatpush1.msra.mxu0 0.0
    %497 = vmatprep.subr.mxu0 0.0
    %498 = vmatpush1.msra.mxu0 0.0
    %499 = vmatprep.subr.mxu0 0.0
    %500 = vmatpush1.msra.mxu0 0.0
    %501 = vmatprep.subr.mxu0 0.0
    %502 = vmatpush1.msra.mxu0 0.0
    %503 = vmatprep.subr.mxu0 0.0
    %504 = vmatpush1.msra.mxu0 0.0
    %505 = vmatprep.subr.mxu0 0.0
    %506 = vmatpush1.msra.mxu0 0.0
    %507 = vmatprep.subr.mxu0 0.0
    %508 = vmatpush1.msra.mxu0 0.0
    %509 = vmatprep.subr.mxu0 0.0
    %510 = vmatpush1.msra.mxu0 0.0
    %511 = vmatprep.subr.mxu0 0.0
    %512 = vmatpush1.msra.mxu0 0.0
    %513 = vmatprep.subr.mxu0 0.0
    %514 = vmatpush1.msra.mxu0 0.0
    %515 = vmatprep.subr.mxu0 0.0
    %516 = vmatpush1.msra.mxu0 0.0
    %517 = vmatprep.subr.mxu0 0.0
    %518 = vmatpush1.msra.mxu0 0.0
    %519 = vmatprep.subr.mxu0 0.0
    %520 = vmatpush1.msra.mxu0 0.0
    %521 = vmatprep.subr.mxu0 0.0
    %522 = vmatpush1.msra.mxu0 0.0
    %523 = vmatprep.subr.mxu0 0.0
    %524 = vmatpush1.msra.mxu0 0.0
    %525 = vmatprep.subr.mxu0 0.0
    %526 = vmatpush1.msra.mxu0 0.0
    %527 = vmatprep.subr.mxu0 0.0
    %528 = vmatpush1.msra.mxu0 0.0
    %529 = vmatprep.subr.mxu0 0.0
    %530 = vmatpush1.msra.mxu0 0.0
    %531 = vmatprep.subr.mxu0 0.0
    %532 = vmatpush1.msra.mxu0 0.0
    %533 = vmatprep.subr.mxu0 0.0
    %534 = vmatpush1.msra.mxu0 0.0
    %535 = vmatprep.subr.mxu0 0.0
    %536 = vmatpush1.msra.mxu0 0.0
    %537 = vmatprep.subr.mxu0 0.0
    %538 = vmatpush1.msra.mxu0 0.0
    %539 = vmatprep.subr.mxu0 0.0
    %540 = vmatpush1.msra.mxu0 0.0
    %541 = vmatprep.subr.mxu0 0.0
    %542 = vmatpush1.msra.mxu0 0.0
    %543 = vmatprep.mubr.f32.mxu0 0.0
    %544 = vmatmul.mubr.f32.gmra.mrb[0].mxu0 %v193
    %v545 = vpop.f32.mrb[0].mxu0
    %v546 = vadd.f32 %v176, %v545
    %v547 = vpop.f32.mrb[0].mxu0
    %v548 = vadd.f32 %v180, %v547
    %549 = vdwg.mxu0
    %v550 = vmax.f32 %v262, 0.0
    %v551 = vmax.f32 %v264, 0.0
    %v552 = vmax.f32 %v333, 0.0
    %v553 = vmax.f32 %v335, 0.0
    %v554 = vmax.f32 %v404, 0.0
    %v555 = vmax.f32 %v406, 0.0
    %v556 = vmax.f32 %v475, 0.0
    %v557 = vmax.f32 %v477, 0.0
    %v558 = vmax.f32 %v546, 0.0
    %v559 = vmax.f32 %v548, 0.0
    %v560 = vld [vmem:[#allocation8] sm:$0xff]
    %v561 = vld [vmem:[#allocation8 + $0x8] sm:$0xff]
    %v562 = vld [vmem:[#allocation8 + $0x10] sm:$0xff]
    %v563 = vld [vmem:[#allocation8 + $0x18] sm:$0xff]
    %v564 = vld [vmem:[#allocation8 + $0x20] sm:$0xff]
    %v565 = vld [vmem:[#allocation8 + $0x28] sm:$0xff]
    %v566 = vld [vmem:[#allocation8 + $0x30] sm:$0xff]
    %v567 = vld [vmem:[#allocation8 + $0x38] sm:$0xff]
    %v568 = vld [vmem:[#allocation8 + $0x40] sm:$0xff]
    %v569 = vld [vmem:[#allocation8 + $0x48] sm:$0xff]
    %v570 = vld [vmem:[#allocation8 + $0x50] sm:$0xff]
    %v571 = vld [vmem:[#allocation8 + $0x58] sm:$0xff]
    %v572 = vld [vmem:[#allocation8 + $0x60] sm:$0xff]
    %v573 = vld [vmem:[#allocation8 + $0x68] sm:$0xff]
    %v574 = vld [vmem:[#allocation8 + $0x70] sm:$0xff]
    %v575 = vld [vmem:[#allocation8 + $0x78] sm:$0xff]
    %v576 = vld [vmem:[#allocation8 + $0x80] sm:$0xff]
    %v577 = vld [vmem:[#allocation8 + $0x88] sm:$0xff]
    %v578 = vld [vmem:[#allocation8 + $0x90] sm:$0xff]
    %v579 = vld [vmem:[#allocation8 + $0x98] sm:$0xff]
    %v580 = vld [vmem:[#allocation8 + $0xa0] sm:$0xff]
    %v581 = vld [vmem:[#allocation8 + $0xa8] sm:$0xff]
    %v582 = vld [vmem:[#allocation8 + $0xb0] sm:$0xff]
    %v583 = vld [vmem:[#allocation8 + $0xb8] sm:$0xff]
    %v584 = vld [vmem:[#allocation8 + $0xc0] sm:$0xff]
    %v585 = vld [vmem:[#allocation8 + $0xc8] sm:$0xff]
    %v586 = vld [vmem:[#allocation8 + $0xd0] sm:$0xff]
    %v587 = vld [vmem:[#allocation8 + $0xd8] sm:$0xff]
    %v588 = vld [vmem:[#allocation8 + $0xe0] sm:$0xff]
    %v589 = vld [vmem:[#allocation8 + $0xe8] sm:$0xff]
    %v590 = vld [vmem:[#allocation8 + $0xf0] sm:$0xff]
    %v591 = vld [vmem:[#allocation8 + $0xf8] sm:$0xff]
    %v592 = vld [vmem:[#allocation8 + $0x100] sm:$0xff]
    %v593 = vld [vmem:[#allocation8 + $0x108] sm:$0xff]
    %v594 = vld [vmem:[#allocation8 + $0x110] sm:$0xff]
    %v595 = vld [vmem:[#allocation8 + $0x118] sm:$0xff]
    %v596 = vld [vmem:[#allocation8 + $0x120] sm:$0xff]
    %v597 = vld [vmem:[#allocation8 + $0x128] sm:$0xff]
    %v598 = vld [vmem:[#allocation8 + $0x130] sm:$0xff]
    %v599 = vld [vmem:[#allocation8 + $0x138] sm:$0xff]
    %v600 = vld [vmem:[#allocation8 + $0x140] sm:$0xff]
    %v601 = vld [vmem:[#allocation8 + $0x148] sm:$0xff]
    %v602 = vld [vmem:[#allocation8 + $0x150] sm:$0xff]
    %v603 = vld [vmem:[#allocation8 + $0x158] sm:$0xff]
    %v604 = vld [vmem:[#allocation8 + $0x160] sm:$0xff]
    %v605 = vld [vmem:[#allocation8 + $0x168] sm:$0xff]
    %v606 = vld [vmem:[#allocation8 + $0x170] sm:$0xff]
    %v607 = vld [vmem:[#allocation8 + $0x178] sm:$0xff]
    %v608 = vld [vmem:[#allocation8 + $0x180] sm:$0xff]
    %v609 = vld [vmem:[#allocation8 + $0x188] sm:$0xff]
    %v610 = vld [vmem:[#allocation8 + $0x190] sm:$0xff]
    %v611 = vld [vmem:[#allocation8 + $0x198] sm:$0xff]
    %v612 = vld [vmem:[#allocation8 + $0x1a0] sm:$0xff]
    %v613 = vld [vmem:[#allocation8 + $0x1a8] sm:$0xff]
    %v614 = vld [vmem:[#allocation8 + $0x1b0] sm:$0xff]
    %v615 = vld [vmem:[#allocation8 + $0x1b8] sm:$0xff]
    %v616 = vld [vmem:[#allocation8 + $0x1c0] sm:$0xff]
    %v617 = vld [vmem:[#allocation8 + $0x1c8] sm:$0xff]
    %v618 = vld [vmem:[#allocation8 + $0x1d0] sm:$0xff]
    %v619 = vld [vmem:[#allocation8 + $0x1d8] sm:$0xff]
    %v620 = vld [vmem:[#allocation8 + $0x1e0] sm:$0xff]
    %v621 = vld [vmem:[#allocation8 + $0x1e8] sm:$0xff]
    %v622 = vld [vmem:[#allocation8 + $0x1f0] sm:$0xff]
    %v623 = vld [vmem:[#allocation8 + $0x1f8] sm:$0xff]
    %v624 = vld [vmem:[#allocation10] sm:$0x3]
    %v626 = vlaneseq
    %v627 = vshrl.u32 %v626, 7
    %v628 = vsub.s32 0, %v627
    %v629 = vrot.slane %v624, %v628
    %v630 = vlaneseq
    %v631 = vshrl.u32 %v630, 7
    %v632 = vsub.s32 1, %v631
    %v633 = vrot.slane %v624, %v632
    %636 = vmatprep.subr.mxu0 %v561
    %637 = vmatpush1.msra.mxu0 %v560
    %638 = vmatprep.subr.mxu0 %v563
    %639 = vmatpush1.msra.mxu0 %v562
    %640 = vmatprep.subr.mxu0 %v565
    %641 = vmatpush1.msra.mxu0 %v564
    %642 = vmatprep.subr.mxu0 %v567
    %643 = vmatpush1.msra.mxu0 %v566
    %644 = vmatprep.subr.mxu0 %v569
    %645 = vmatpush1.msra.mxu0 %v568
    %646 = vmatprep.subr.mxu0 %v571
    %647 = vmatpush1.msra.mxu0 %v570
    %648 = vmatprep.subr.mxu0 %v573
    %649 = vmatpush1.msra.mxu0 %v572
    %650 = vmatprep.subr.mxu0 %v575
    %651 = vmatpush1.msra.mxu0 %v574
    %652 = vmatprep.subr.mxu0 %v577
    %653 = vmatpush1.msra.mxu0 %v576
    %654 = vmatprep.subr.mxu0 %v579
    %655 = vmatpush1.msra.mxu0 %v578
    %656 = vmatprep.subr.mxu0 %v581
    %657 = vmatpush1.msra.mxu0 %v580
    %658 = vmatprep.subr.mxu0 %v583
    %659 = vmatpush1.msra.mxu0 %v582
    %660 = vmatprep.subr.mxu0 %v585
    %661 = vmatpush1.msra.mxu0 %v584
    %662 = vmatprep.subr.mxu0 %v587
    %663 = vmatpush1.msra.mxu0 %v586
    %664 = vmatprep.subr.mxu0 %v589
    %665 = vmatpush1.msra.mxu0 %v588
    %666 = vmatprep.subr.mxu0 %v591
    %667 = vmatpush1.msra.mxu0 %v590
    %668 = vmatprep.subr.mxu0 %v593
    %669 = vmatpush1.msra.mxu0 %v592
    %670 = vmatprep.subr.mxu0 %v595
    %671 = vmatpush1.msra.mxu0 %v594
    %672 = vmatprep.subr.mxu0 %v597
    %673 = vmatpush1.msra.mxu0 %v596
    %674 = vmatprep.subr.mxu0 %v599
    %675 = vmatpush1.msra.mxu0 %v598
    %676 = vmatprep.subr.mxu0 %v601
    %677 = vmatpush1.msra.mxu0 %v600
    %678 = vmatprep.subr.mxu0 %v603
    %679 = vmatpush1.msra.mxu0 %v602
    %680 = vmatprep.subr.mxu0 %v605
    %681 = vmatpush1.msra.mxu0 %v604
    %682 = vmatprep.subr.mxu0 %v607
    %683 = vmatpush1.msra.mxu0 %v606
    %684 = vmatprep.subr.mxu0 %v609
    %685 = vmatpush1.msra.mxu0 %v608
    %686 = vmatprep.subr.mxu0 %v611
    %687 = vmatpush1.msra.mxu0 %v610
    %688 = vmatprep.subr.mxu0 %v613
    %689 = vmatpush1.msra.mxu0 %v612
    %690 = vmatprep.subr.mxu0 %v615
    %691 = vmatpush1.msra.mxu0 %v614
    %692 = vmatprep.subr.mxu0 %v617
    %693 = vmatpush1.msra.mxu0 %v616
    %694 = vmatprep.subr.mxu0 %v619
    %695 = vmatpush1.msra.mxu0 %v618
    %696 = vmatprep.subr.mxu0 %v621
    %697 = vmatpush1.msra.mxu0 %v620
    %698 = vmatprep.subr.mxu0 %v623
    %699 = vmatpush1.msra.mxu0 %v622
    %700 = vmatprep.mubr.f32.mxu0 %v551
    %701 = vmatmul.mubr.f32.gmra.mrb[0].mxu0 %v550
    %v702 = vpop.f32.mrb[0].mxu0
    %v703 = vadd.f32 %v629, %v702
    %v704 = vpop.f32.mrb[0].mxu0
    %v705 = vadd.f32 %v633, %v704
    %706 = vdwg.mxu0
    %v707 = vmax.f32 %v703, 0.0
    %v708 = vmax.f32 %v705, 0.0
    %s709 = scalar_lea.vmem [#allocation8], 512
    %v710 = vld [vmem:[%s709] sm:$0xff]
    %v711 = vld [vmem:[%s709 + $0x8] sm:$0xff]
    %v712 = vld [vmem:[%s709 + $0x10] sm:$0xff]
    %v713 = vld [vmem:[%s709 + $0x18] sm:$0xff]
    %v714 = vld [vmem:[%s709 + $0x20] sm:$0xff]
    %v715 = vld [vmem:[%s709 + $0x28] sm:$0xff]
    %v716 = vld [vmem:[%s709 + $0x30] sm:$0xff]
    %v717 = vld [vmem:[%s709 + $0x38] sm:$0xff]
    %v718 = vld [vmem:[%s709 + $0x40] sm:$0xff]
    %v719 = vld [vmem:[%s709 + $0x48] sm:$0xff]
    %v720 = vld [vmem:[%s709 + $0x50] sm:$0xff]
    %v721 = vld [vmem:[%s709 + $0x58] sm:$0xff]
    %v722 = vld [vmem:[%s709 + $0x60] sm:$0xff]
    %v723 = vld [vmem:[%s709 + $0x68] sm:$0xff]
    %v724 = vld [vmem:[%s709 + $0x70] sm:$0xff]
    %v725 = vld [vmem:[%s709 + $0x78] sm:$0xff]
    %v726 = vld [vmem:[%s709 + $0x80] sm:$0xff]
    %v727 = vld [vmem:[%s709 + $0x88] sm:$0xff]
    %v728 = vld [vmem:[%s709 + $0x90] sm:$0xff]
    %v729 = vld [vmem:[%s709 + $0x98] sm:$0xff]
    %v730 = vld [vmem:[%s709 + $0xa0] sm:$0xff]
    %v731 = vld [vmem:[%s709 + $0xa8] sm:$0xff]
    %v732 = vld [vmem:[%s709 + $0xb0] sm:$0xff]
    %v733 = vld [vmem:[%s709 + $0xb8] sm:$0xff]
    %v734 = vld [vmem:[%s709 + $0xc0] sm:$0xff]
    %v735 = vld [vmem:[%s709 + $0xc8] sm:$0xff]
    %v736 = vld [vmem:[%s709 + $0xd0] sm:$0xff]
    %v737 = vld [vmem:[%s709 + $0xd8] sm:$0xff]
    %v738 = vld [vmem:[%s709 + $0xe0] sm:$0xff]
    %v739 = vld [vmem:[%s709 + $0xe8] sm:$0xff]
    %v740 = vld [vmem:[%s709 + $0xf0] sm:$0xff]
    %v741 = vld [vmem:[%s709 + $0xf8] sm:$0xff]
    %v742 = vld [vmem:[%s709 + $0x100] sm:$0xff]
    %v743 = vld [vmem:[%s709 + $0x108] sm:$0xff]
    %v744 = vld [vmem:[%s709 + $0x110] sm:$0xff]
    %v745 = vld [vmem:[%s709 + $0x118] sm:$0xff]
    %v746 = vld [vmem:[%s709 + $0x120] sm:$0xff]
    %v747 = vld [vmem:[%s709 + $0x128] sm:$0xff]
    %v748 = vld [vmem:[%s709 + $0x130] sm:$0xff]
    %v749 = vld [vmem:[%s709 + $0x138] sm:$0xff]
    %v750 = vld [vmem:[%s709 + $0x140] sm:$0xff]
    %v751 = vld [vmem:[%s709 + $0x148] sm:$0xff]
    %v752 = vld [vmem:[%s709 + $0x150] sm:$0xff]
    %v753 = vld [vmem:[%s709 + $0x158] sm:$0xff]
    %v754 = vld [vmem:[%s709 + $0x160] sm:$0xff]
    %v755 = vld [vmem:[%s709 + $0x168] sm:$0xff]
    %v756 = vld [vmem:[%s709 + $0x170] sm:$0xff]
    %v757 = vld [vmem:[%s709 + $0x178] sm:$0xff]
    %v758 = vld [vmem:[%s709 + $0x180] sm:$0xff]
    %v759 = vld [vmem:[%s709 + $0x188] sm:$0xff]
    %v760 = vld [vmem:[%s709 + $0x190] sm:$0xff]
    %v761 = vld [vmem:[%s709 + $0x198] sm:$0xff]
    %v762 = vld [vmem:[%s709 + $0x1a0] sm:$0xff]
    %v763 = vld [vmem:[%s709 + $0x1a8] sm:$0xff]
    %v764 = vld [vmem:[%s709 + $0x1b0] sm:$0xff]
    %v765 = vld [vmem:[%s709 + $0x1b8] sm:$0xff]
    %v766 = vld [vmem:[%s709 + $0x1c0] sm:$0xff]
    %v767 = vld [vmem:[%s709 + $0x1c8] sm:$0xff]
    %v768 = vld [vmem:[%s709 + $0x1d0] sm:$0xff]
    %v769 = vld [vmem:[%s709 + $0x1d8] sm:$0xff]
    %v770 = vld [vmem:[%s709 + $0x1e0] sm:$0xff]
    %v771 = vld [vmem:[%s709 + $0x1e8] sm:$0xff]
    %v772 = vld [vmem:[%s709 + $0x1f0] sm:$0xff]
    %v773 = vld [vmem:[%s709 + $0x1f8] sm:$0xff]
    %s774 = scalar_lea.vmem [#allocation10], 2
    %v775 = vld [vmem:[%s774] sm:$0x3]
    %v777 = vlaneseq
    %v778 = vshrl.u32 %v777, 7
    %v779 = vsub.s32 0, %v778
    %v780 = vrot.slane %v775, %v779
    %v781 = vlaneseq
    %v782 = vshrl.u32 %v781, 7
    %v783 = vsub.s32 1, %v782
    %v784 = vrot.slane %v775, %v783
    %787 = vmatprep.subr.mxu0 %v711
    %788 = vmatpush1.msra.mxu0 %v710
    %789 = vmatprep.subr.mxu0 %v713
    %790 = vmatpush1.msra.mxu0 %v712
    %791 = vmatprep.subr.mxu0 %v715
    %792 = vmatpush1.msra.mxu0 %v714
    %793 = vmatprep.subr.mxu0 %v717
    %794 = vmatpush1.msra.mxu0 %v716
    %795 = vmatprep.subr.mxu0 %v719
    %796 = vmatpush1.msra.mxu0 %v718
    %797 = vmatprep.subr.mxu0 %v721
    %798 = vmatpush1.msra.mxu0 %v720
    %799 = vmatprep.subr.mxu0 %v723
    %800 = vmatpush1.msra.mxu0 %v722
    %801 = vmatprep.subr.mxu0 %v725
    %802 = vmatpush1.msra.mxu0 %v724
    %803 = vmatprep.subr.mxu0 %v727
    %804 = vmatpush1.msra.mxu0 %v726
    %805 = vmatprep.subr.mxu0 %v729
    %806 = vmatpush1.msra.mxu0 %v728
    %807 = vmatprep.subr.mxu0 %v731
    %808 = vmatpush1.msra.mxu0 %v730
    %809 = vmatprep.subr.mxu0 %v733
    %810 = vmatpush1.msra.mxu0 %v732
    %811 = vmatprep.subr.mxu0 %v735
    %812 = vmatpush1.msra.mxu0 %v734
    %813 = vmatprep.subr.mxu0 %v737
    %814 = vmatpush1.msra.mxu0 %v736
    %815 = vmatprep.subr.mxu0 %v739
    %816 = vmatpush1.msra.mxu0 %v738
    %817 = vmatprep.subr.mxu0 %v741
    %818 = vmatpush1.msra.mxu0 %v740
    %819 = vmatprep.subr.mxu0 %v743
    %820 = vmatpush1.msra.mxu0 %v742
    %821 = vmatprep.subr.mxu0 %v745
    %822 = vmatpush1.msra.mxu0 %v744
    %823 = vmatprep.subr.mxu0 %v747
    %824 = vmatpush1.msra.mxu0 %v746
    %825 = vmatprep.subr.mxu0 %v749
    %826 = vmatpush1.msra.mxu0 %v748
    %827 = vmatprep.subr.mxu0 %v751
    %828 = vmatpush1.msra.mxu0 %v750
    %829 = vmatprep.subr.mxu0 %v753
    %830 = vmatpush1.msra.mxu0 %v752
    %831 = vmatprep.subr.mxu0 %v755
    %832 = vmatpush1.msra.mxu0 %v754
    %833 = vmatprep.subr.mxu0 %v757
    %834 = vmatpush1.msra.mxu0 %v756
    %835 = vmatprep.subr.mxu0 %v759
    %836 = vmatpush1.msra.mxu0 %v758
    %837 = vmatprep.subr.mxu0 %v761
    %838 = vmatpush1.msra.mxu0 %v760
    %839 = vmatprep.subr.mxu0 %v763
    %840 = vmatpush1.msra.mxu0 %v762
    %841 = vmatprep.subr.mxu0 %v765
    %842 = vmatpush1.msra.mxu0 %v764
    %843 = vmatprep.subr.mxu0 %v767
    %844 = vmatpush1.msra.mxu0 %v766
    %845 = vmatprep.subr.mxu0 %v769
    %846 = vmatpush1.msra.mxu0 %v768
    %847 = vmatprep.subr.mxu0 %v771
    %848 = vmatpush1.msra.mxu0 %v770
    %849 = vmatprep.subr.mxu0 %v773
    %850 = vmatpush1.msra.mxu0 %v772
    %851 = vmatprep.mubr.f32.mxu0 %v553
    %852 = vmatmul.mubr.f32.gmra.mrb[0].mxu0 %v552
    %v853 = vpop.f32.mrb[0].mxu0
    %v854 = vadd.f32 %v780, %v853
    %v855 = vpop.f32.mrb[0].mxu0
    %v856 = vadd.f32 %v784, %v855
    %857 = vdwg.mxu0
    %v858 = vmax.f32 %v854, 0.0
    %v859 = vmax.f32 %v856, 0.0
    %s860 = scalar_lea.vmem [#allocation8], 1024
    %v861 = vld [vmem:[%s860] sm:$0xff]
    %v862 = vld [vmem:[%s860 + $0x8] sm:$0xff]
    %v863 = vld [vmem:[%s860 + $0x10] sm:$0xff]
    %v864 = vld [vmem:[%s860 + $0x18] sm:$0xff]
    %v865 = vld [vmem:[%s860 + $0x20] sm:$0xff]
    %v866 = vld [vmem:[%s860 + $0x28] sm:$0xff]
    %v867 = vld [vmem:[%s860 + $0x30] sm:$0xff]
    %v868 = vld [vmem:[%s860 + $0x38] sm:$0xff]
    %v869 = vld [vmem:[%s860 + $0x40] sm:$0xff]
    %v870 = vld [vmem:[%s860 + $0x48] sm:$0xff]
    %v871 = vld [vmem:[%s860 + $0x50] sm:$0xff]
    %v872 = vld [vmem:[%s860 + $0x58] sm:$0xff]
    %v873 = vld [vmem:[%s860 + $0x60] sm:$0xff]
    %v874 = vld [vmem:[%s860 + $0x68] sm:$0xff]
    %v875 = vld [vmem:[%s860 + $0x70] sm:$0xff]
    %v876 = vld [vmem:[%s860 + $0x78] sm:$0xff]
    %v877 = vld [vmem:[%s860 + $0x80] sm:$0xff]
    %v878 = vld [vmem:[%s860 + $0x88] sm:$0xff]
    %v879 = vld [vmem:[%s860 + $0x90] sm:$0xff]
    %v880 = vld [vmem:[%s860 + $0x98] sm:$0xff]
    %v881 = vld [vmem:[%s860 + $0xa0] sm:$0xff]
    %v882 = vld [vmem:[%s860 + $0xa8] sm:$0xff]
    %v883 = vld [vmem:[%s860 + $0xb0] sm:$0xff]
    %v884 = vld [vmem:[%s860 + $0xb8] sm:$0xff]
    %v885 = vld [vmem:[%s860 + $0xc0] sm:$0xff]
    %v886 = vld [vmem:[%s860 + $0xc8] sm:$0xff]
    %v887 = vld [vmem:[%s860 + $0xd0] sm:$0xff]
    %v888 = vld [vmem:[%s860 + $0xd8] sm:$0xff]
    %v889 = vld [vmem:[%s860 + $0xe0] sm:$0xff]
    %v890 = vld [vmem:[%s860 + $0xe8] sm:$0xff]
    %v891 = vld [vmem:[%s860 + $0xf0] sm:$0xff]
    %v892 = vld [vmem:[%s860 + $0xf8] sm:$0xff]
    %v893 = vld [vmem:[%s860 + $0x100] sm:$0xff]
    %v894 = vld [vmem:[%s860 + $0x108] sm:$0xff]
    %v895 = vld [vmem:[%s860 + $0x110] sm:$0xff]
    %v896 = vld [vmem:[%s860 + $0x118] sm:$0xff]
    %v897 = vld [vmem:[%s860 + $0x120] sm:$0xff]
    %v898 = vld [vmem:[%s860 + $0x128] sm:$0xff]
    %v899 = vld [vmem:[%s860 + $0x130] sm:$0xff]
    %v900 = vld [vmem:[%s860 + $0x138] sm:$0xff]
    %v901 = vld [vmem:[%s860 + $0x140] sm:$0xff]
    %v902 = vld [vmem:[%s860 + $0x148] sm:$0xff]
    %v903 = vld [vmem:[%s860 + $0x150] sm:$0xff]
    %v904 = vld [vmem:[%s860 + $0x158] sm:$0xff]
    %v905 = vld [vmem:[%s860 + $0x160] sm:$0xff]
    %v906 = vld [vmem:[%s860 + $0x168] sm:$0xff]
    %v907 = vld [vmem:[%s860 + $0x170] sm:$0xff]
    %v908 = vld [vmem:[%s860 + $0x178] sm:$0xff]
    %v909 = vld [vmem:[%s860 + $0x180] sm:$0xff]
    %v910 = vld [vmem:[%s860 + $0x188] sm:$0xff]
    %v911 = vld [vmem:[%s860 + $0x190] sm:$0xff]
    %v912 = vld [vmem:[%s860 + $0x198] sm:$0xff]
    %v913 = vld [vmem:[%s860 + $0x1a0] sm:$0xff]
    %v914 = vld [vmem:[%s860 + $0x1a8] sm:$0xff]
    %v915 = vld [vmem:[%s860 + $0x1b0] sm:$0xff]
    %v916 = vld [vmem:[%s860 + $0x1b8] sm:$0xff]
    %v917 = vld [vmem:[%s860 + $0x1c0] sm:$0xff]
    %v918 = vld [vmem:[%s860 + $0x1c8] sm:$0xff]
    %v919 = vld [vmem:[%s860 + $0x1d0] sm:$0xff]
    %v920 = vld [vmem:[%s860 + $0x1d8] sm:$0xff]
    %v921 = vld [vmem:[%s860 + $0x1e0] sm:$0xff]
    %v922 = vld [vmem:[%s860 + $0x1e8] sm:$0xff]
    %v923 = vld [vmem:[%s860 + $0x1f0] sm:$0xff]
    %v924 = vld [vmem:[%s860 + $0x1f8] sm:$0xff]
    %s925 = scalar_lea.vmem [#allocation10], 4
    %v926 = vld [vmem:[%s925] sm:$0x3]
    %v928 = vlaneseq
    %v929 = vshrl.u32 %v928, 7
    %v930 = vsub.s32 0, %v929
    %v931 = vrot.slane %v926, %v930
    %v932 = vlaneseq
    %v933 = vshrl.u32 %v932, 7
    %v934 = vsub.s32 1, %v933
    %v935 = vrot.slane %v926, %v934
    %938 = vmatprep.subr.mxu0 %v862
    %939 = vmatpush1.msra.mxu0 %v861
    %940 = vmatprep.subr.mxu0 %v864
    %941 = vmatpush1.msra.mxu0 %v863
    %942 = vmatprep.subr.mxu0 %v866
    %943 = vmatpush1.msra.mxu0 %v865
    %944 = vmatprep.subr.mxu0 %v868
    %945 = vmatpush1.msra.mxu0 %v867
    %946 = vmatprep.subr.mxu0 %v870
    %947 = vmatpush1.msra.mxu0 %v869
    %948 = vmatprep.subr.mxu0 %v872
    %949 = vmatpush1.msra.mxu0 %v871
    %950 = vmatprep.subr.mxu0 %v874
    %951 = vmatpush1.msra.mxu0 %v873
    %952 = vmatprep.subr.mxu0 %v876
    %953 = vmatpush1.msra.mxu0 %v875
    %954 = vmatprep.subr.mxu0 %v878
    %955 = vmatpush1.msra.mxu0 %v877
    %956 = vmatprep.subr.mxu0 %v880
    %957 = vmatpush1.msra.mxu0 %v879
    %958 = vmatprep.subr.mxu0 %v882
    %959 = vmatpush1.msra.mxu0 %v881
    %960 = vmatprep.subr.mxu0 %v884
    %961 = vmatpush1.msra.mxu0 %v883
    %962 = vmatprep.subr.mxu0 %v886
    %963 = vmatpush1.msra.mxu0 %v885
    %964 = vmatprep.subr.mxu0 %v888
    %965 = vmatpush1.msra.mxu0 %v887
    %966 = vmatprep.subr.mxu0 %v890
    %967 = vmatpush1.msra.mxu0 %v889
    %968 = vmatprep.subr.mxu0 %v892
    %969 = vmatpush1.msra.mxu0 %v891
    %970 = vmatprep.subr.mxu0 %v894
    %971 = vmatpush1.msra.mxu0 %v893
    %972 = vmatprep.subr.mxu0 %v896
    %973 = vmatpush1.msra.mxu0 %v895
    %974 = vmatprep.subr.mxu0 %v898
    %975 = vmatpush1.msra.mxu0 %v897
    %976 = vmatprep.subr.mxu0 %v900
    %977 = vmatpush1.msra.mxu0 %v899
    %978 = vmatprep.subr.mxu0 %v902
    %979 = vmatpush1.msra.mxu0 %v901
    %980 = vmatprep.subr.mxu0 %v904
    %981 = vmatpush1.msra.mxu0 %v903
    %982 = vmatprep.subr.mxu0 %v906
    %983 = vmatpush1.msra.mxu0 %v905
    %984 = vmatprep.subr.mxu0 %v908
    %985 = vmatpush1.msra.mxu0 %v907
    %986 = vmatprep.subr.mxu0 %v910
    %987 = vmatpush1.msra.mxu0 %v909
    %988 = vmatprep.subr.mxu0 %v912
    %989 = vmatpush1.msra.mxu0 %v911
    %990 = vmatprep.subr.mxu0 %v914
    %991 = vmatpush1.msra.mxu0 %v913
    %992 = vmatprep.subr.mxu0 %v916
    %993 = vmatpush1.msra.mxu0 %v915
    %994 = vmatprep.subr.mxu0 %v918
    %995 = vmatpush1.msra.mxu0 %v917
    %996 = vmatprep.subr.mxu0 %v920
    %997 = vmatpush1.msra.mxu0 %v919
    %998 = vmatprep.subr.mxu0 %v922
    %999 = vmatpush1.msra.mxu0 %v921
    %1000 = vmatprep.subr.mxu0 %v924
    %1001 = vmatpush1.msra.mxu0 %v923
    %1002 = vmatprep.mubr.f32.mxu0 %v555
    %1003 = vmatmul.mubr.f32.gmra.mrb[0].mxu0 %v554
    %v1004 = vpop.f32.mrb[0].mxu0
    %v1005 = vadd.f32 %v931, %v1004
    %v1006 = vpop.f32.mrb[0].mxu0
    %v1007 = vadd.f32 %v935, %v1006
    %1008 = vdwg.mxu0
    %v1009 = vmax.f32 %v1005, 0.0
    %v1010 = vmax.f32 %v1007, 0.0
    %s1011 = scalar_lea.vmem [#allocation8], 1536
    %v1012 = vld [vmem:[%s1011] sm:$0xff]
    %v1013 = vld [vmem:[%s1011 + $0x8] sm:$0xff]
    %v1014 = vld [vmem:[%s1011 + $0x10] sm:$0xff]
    %v1015 = vld [vmem:[%s1011 + $0x18] sm:$0xff]
    %v1016 = vld [vmem:[%s1011 + $0x20] sm:$0xff]
    %v1017 = vld [vmem:[%s1011 + $0x28] sm:$0xff]
    %v1018 = vld [vmem:[%s1011 + $0x30] sm:$0xff]
    %v1019 = vld [vmem:[%s1011 + $0x38] sm:$0xff]
    %v1020 = vld [vmem:[%s1011 + $0x40] sm:$0xff]
    %v1021 = vld [vmem:[%s1011 + $0x48] sm:$0xff]
    %v1022 = vld [vmem:[%s1011 + $0x50] sm:$0xff]
    %v1023 = vld [vmem:[%s1011 + $0x58] sm:$0xff]
    %v1024 = vld [vmem:[%s1011 + $0x60] sm:$0xff]
    %v1025 = vld [vmem:[%s1011 + $0x68] sm:$0xff]
    %v1026 = vld [vmem:[%s1011 + $0x70] sm:$0xff]
    %v1027 = vld [vmem:[%s1011 + $0x78] sm:$0xff]
    %v1028 = vld [vmem:[%s1011 + $0x80] sm:$0xff]
    %v1029 = vld [vmem:[%s1011 + $0x88] sm:$0xff]
    %v1030 = vld [vmem:[%s1011 + $0x90] sm:$0xff]
    %v1031 = vld [vmem:[%s1011 + $0x98] sm:$0xff]
    %v1032 = vld [vmem:[%s1011 + $0xa0] sm:$0xff]
    %v1033 = vld [vmem:[%s1011 + $0xa8] sm:$0xff]
    %v1034 = vld [vmem:[%s1011 + $0xb0] sm:$0xff]
    %v1035 = vld [vmem:[%s1011 + $0xb8] sm:$0xff]
    %v1036 = vld [vmem:[%s1011 + $0xc0] sm:$0xff]
    %v1037 = vld [vmem:[%s1011 + $0xc8] sm:$0xff]
    %v1038 = vld [vmem:[%s1011 + $0xd0] sm:$0xff]
    %v1039 = vld [vmem:[%s1011 + $0xd8] sm:$0xff]
    %v1040 = vld [vmem:[%s1011 + $0xe0] sm:$0xff]
    %v1041 = vld [vmem:[%s1011 + $0xe8] sm:$0xff]
    %v1042 = vld [vmem:[%s1011 + $0xf0] sm:$0xff]
    %v1043 = vld [vmem:[%s1011 + $0xf8] sm:$0xff]
    %v1044 = vld [vmem:[%s1011 + $0x100] sm:$0xff]
    %v1045 = vld [vmem:[%s1011 + $0x108] sm:$0xff]
    %v1046 = vld [vmem:[%s1011 + $0x110] sm:$0xff]
    %v1047 = vld [vmem:[%s1011 + $0x118] sm:$0xff]
    %v1048 = vld [vmem:[%s1011 + $0x120] sm:$0xff]
    %v1049 = vld [vmem:[%s1011 + $0x128] sm:$0xff]
    %v1050 = vld [vmem:[%s1011 + $0x130] sm:$0xff]
    %v1051 = vld [vmem:[%s1011 + $0x138] sm:$0xff]
    %v1052 = vld [vmem:[%s1011 + $0x140] sm:$0xff]
    %v1053 = vld [vmem:[%s1011 + $0x148] sm:$0xff]
    %v1054 = vld [vmem:[%s1011 + $0x150] sm:$0xff]
    %v1055 = vld [vmem:[%s1011 + $0x158] sm:$0xff]
    %v1056 = vld [vmem:[%s1011 + $0x160] sm:$0xff]
    %v1057 = vld [vmem:[%s1011 + $0x168] sm:$0xff]
    %v1058 = vld [vmem:[%s1011 + $0x170] sm:$0xff]
    %v1059 = vld [vmem:[%s1011 + $0x178] sm:$0xff]
    %v1060 = vld [vmem:[%s1011 + $0x180] sm:$0xff]
    %v1061 = vld [vmem:[%s1011 + $0x188] sm:$0xff]
    %v1062 = vld [vmem:[%s1011 + $0x190] sm:$0xff]
    %v1063 = vld [vmem:[%s1011 + $0x198] sm:$0xff]
    %v1064 = vld [vmem:[%s1011 + $0x1a0] sm:$0xff]
    %v1065 = vld [vmem:[%s1011 + $0x1a8] sm:$0xff]
    %v1066 = vld [vmem:[%s1011 + $0x1b0] sm:$0xff]
    %v1067 = vld [vmem:[%s1011 + $0x1b8] sm:$0xff]
    %v1068 = vld [vmem:[%s1011 + $0x1c0] sm:$0xff]
    %v1069 = vld [vmem:[%s1011 + $0x1c8] sm:$0xff]
    %v1070 = vld [vmem:[%s1011 + $0x1d0] sm:$0xff]
    %v1071 = vld [vmem:[%s1011 + $0x1d8] sm:$0xff]
    %v1072 = vld [vmem:[%s1011 + $0x1e0] sm:$0xff]
    %v1073 = vld [vmem:[%s1011 + $0x1e8] sm:$0xff]
    %v1074 = vld [vmem:[%s1011 + $0x1f0] sm:$0xff]
    %v1075 = vld [vmem:[%s1011 + $0x1f8] sm:$0xff]
    %s1076 = scalar_lea.vmem [#allocation10], 6
    %v1077 = vld [vmem:[%s1076] sm:$0x3]
    %v1079 = vlaneseq
    %v1080 = vshrl.u32 %v1079, 7
    %v1081 = vsub.s32 0, %v1080
    %v1082 = vrot.slane %v1077, %v1081
    %v1083 = vlaneseq
    %v1084 = vshrl.u32 %v1083, 7
    %v1085 = vsub.s32 1, %v1084
    %v1086 = vrot.slane %v1077, %v1085
    %1089 = vmatprep.subr.mxu0 %v1013
    %1090 = vmatpush1.msra.mxu0 %v1012
    %1091 = vmatprep.subr.mxu0 %v1015
    %1092 = vmatpush1.msra.mxu0 %v1014
    %1093 = vmatprep.subr.mxu0 %v1017
    %1094 = vmatpush1.msra.mxu0 %v1016
    %1095 = vmatprep.subr.mxu0 %v1019
    %1096 = vmatpush1.msra.mxu0 %v1018
    %1097 = vmatprep.subr.mxu0 %v1021
    %1098 = vmatpush1.msra.mxu0 %v1020
    %1099 = vmatprep.subr.mxu0 %v1023
    %1100 = vmatpush1.msra.mxu0 %v1022
    %1101 = vmatprep.subr.mxu0 %v1025
    %1102 = vmatpush1.msra.mxu0 %v1024
    %1103 = vmatprep.subr.mxu0 %v1027
    %1104 = vmatpush1.msra.mxu0 %v1026
    %1105 = vmatprep.subr.mxu0 %v1029
    %1106 = vmatpush1.msra.mxu0 %v1028
    %1107 = vmatprep.subr.mxu0 %v1031
    %1108 = vmatpush1.msra.mxu0 %v1030
    %1109 = vmatprep.subr.mxu0 %v1033
    %1110 = vmatpush1.msra.mxu0 %v1032
    %1111 = vmatprep.subr.mxu0 %v1035
    %1112 = vmatpush1.msra.mxu0 %v1034
    %1113 = vmatprep.subr.mxu0 %v1037
    %1114 = vmatpush1.msra.mxu0 %v1036
    %1115 = vmatprep.subr.mxu0 %v1039
    %1116 = vmatpush1.msra.mxu0 %v1038
    %1117 = vmatprep.subr.mxu0 %v1041
    %1118 = vmatpush1.msra.mxu0 %v1040
    %1119 = vmatprep.subr.mxu0 %v1043
    %1120 = vmatpush1.msra.mxu0 %v1042
    %1121 = vmatprep.subr.mxu0 %v1045
    %1122 = vmatpush1.msra.mxu0 %v1044
    %1123 = vmatprep.subr.mxu0 %v1047
    %1124 = vmatpush1.msra.mxu0 %v1046
    %1125 = vmatprep.subr.mxu0 %v1049
    %1126 = vmatpush1.msra.mxu0 %v1048
    %1127 = vmatprep.subr.mxu0 %v1051
    %1128 = vmatpush1.msra.mxu0 %v1050
    %1129 = vmatprep.subr.mxu0 %v1053
    %1130 = vmatpush1.msra.mxu0 %v1052
    %1131 = vmatprep.subr.mxu0 %v1055
    %1132 = vmatpush1.msra.mxu0 %v1054
    %1133 = vmatprep.subr.mxu0 %v1057
    %1134 = vmatpush1.msra.mxu0 %v1056
    %1135 = vmatprep.subr.mxu0 %v1059
    %1136 = vmatpush1.msra.mxu0 %v1058
    %1137 = vmatprep.subr.mxu0 %v1061
    %1138 = vmatpush1.msra.mxu0 %v1060
    %1139 = vmatprep.subr.mxu0 %v1063
    %1140 = vmatpush1.msra.mxu0 %v1062
    %1141 = vmatprep.subr.mxu0 %v1065
    %1142 = vmatpush1.msra.mxu0 %v1064
    %1143 = vmatprep.subr.mxu0 %v1067
    %1144 = vmatpush1.msra.mxu0 %v1066
    %1145 = vmatprep.subr.mxu0 %v1069
    %1146 = vmatpush1.msra.mxu0 %v1068
    %1147 = vmatprep.subr.mxu0 %v1071
    %1148 = vmatpush1.msra.mxu0 %v1070
    %1149 = vmatprep.subr.mxu0 %v1073
    %1150 = vmatpush1.msra.mxu0 %v1072
    %1151 = vmatprep.subr.mxu0 %v1075
    %1152 = vmatpush1.msra.mxu0 %v1074
    %1153 = vmatprep.mubr.f32.mxu0 %v557
    %1154 = vmatmul.mubr.f32.gmra.mrb[0].mxu0 %v556
    %v1155 = vpop.f32.mrb[0].mxu0
    %v1156 = vadd.f32 %v1082, %v1155
    %v1157 = vpop.f32.mrb[0].mxu0
    %v1158 = vadd.f32 %v1086, %v1157
    %1159 = vdwg.mxu0
    %v1160 = vmax.f32 %v1156, 0.0
    %v1161 = vmax.f32 %v1158, 0.0
    %s1162 = scalar_lea.vmem [#allocation8], 2048
    %v1163 = vld [vmem:[%s1162] sm:$0xff]
    %v1164 = vld [vmem:[%s1162 + $0x8] sm:$0xff]
    %v1165 = vld [vmem:[%s1162 + $0x10] sm:$0xff]
    %v1166 = vld [vmem:[%s1162 + $0x18] sm:$0xff]
    %v1167 = vld [vmem:[%s1162 + $0x20] sm:$0xff]
    %v1168 = vld [vmem:[%s1162 + $0x28] sm:$0xff]
    %v1169 = vld [vmem:[%s1162 + $0x30] sm:$0xff]
    %v1170 = vld [vmem:[%s1162 + $0x38] sm:$0xff]
    %v1171 = vld [vmem:[%s1162 + $0x40] sm:$0xff]
    %v1172 = vld [vmem:[%s1162 + $0x48] sm:$0xff]
    %v1173 = vld [vmem:[%s1162 + $0x50] sm:$0xff]
    %v1174 = vld [vmem:[%s1162 + $0x58] sm:$0xff]
    %v1175 = vld [vmem:[%s1162 + $0x60] sm:$0xff]
    %v1176 = vld [vmem:[%s1162 + $0x68] sm:$0xff]
    %v1177 = vld [vmem:[%s1162 + $0x70] sm:$0xff]
    %v1178 = vld [vmem:[%s1162 + $0x78] sm:$0xff]
    %v1179 = vld [vmem:[%s1162 + $0x80] sm:$0xff]
    %v1180 = vld [vmem:[%s1162 + $0x88] sm:$0xff]
    %v1181 = vld [vmem:[%s1162 + $0x90] sm:$0xff]
    %v1182 = vld [vmem:[%s1162 + $0x98] sm:$0xff]
    %v1183 = vld [vmem:[%s1162 + $0xa0] sm:$0xff]
    %v1184 = vld [vmem:[%s1162 + $0xa8] sm:$0xff]
    %v1185 = vld [vmem:[%s1162 + $0xb0] sm:$0xff]
    %v1186 = vld [vmem:[%s1162 + $0xb8] sm:$0xff]
    %v1187 = vld [vmem:[%s1162 + $0xc0] sm:$0xff]
    %v1188 = vld [vmem:[%s1162 + $0xc8] sm:$0xff]
    %v1189 = vld [vmem:[%s1162 + $0xd0] sm:$0xff]
    %v1190 = vld [vmem:[%s1162 + $0xd8] sm:$0xff]
    %v1191 = vld [vmem:[%s1162 + $0xe0] sm:$0xff]
    %v1192 = vld [vmem:[%s1162 + $0xe8] sm:$0xff]
    %v1193 = vld [vmem:[%s1162 + $0xf0] sm:$0xff]
    %v1194 = vld [vmem:[%s1162 + $0xf8] sm:$0xff]
    %v1195 = vld [vmem:[%s1162 + $0x100] sm:$0xff]
    %v1196 = vld [vmem:[%s1162 + $0x108] sm:$0xff]
    %v1197 = vld [vmem:[%s1162 + $0x110] sm:$0xff]
    %v1198 = vld [vmem:[%s1162 + $0x118] sm:$0xff]
    %v1199 = vld [vmem:[%s1162 + $0x120] sm:$0xff]
    %v1200 = vld [vmem:[%s1162 + $0x128] sm:$0xff]
    %v1201 = vld [vmem:[%s1162 + $0x130] sm:$0xff]
    %v1202 = vld [vmem:[%s1162 + $0x138] sm:$0xff]
    %v1203 = vld [vmem:[%s1162 + $0x140] sm:$0xff]
    %v1204 = vld [vmem:[%s1162 + $0x148] sm:$0xff]
    %v1205 = vld [vmem:[%s1162 + $0x150] sm:$0xff]
    %v1206 = vld [vmem:[%s1162 + $0x158] sm:$0xff]
    %v1207 = vld [vmem:[%s1162 + $0x160] sm:$0xff]
    %v1208 = vld [vmem:[%s1162 + $0x168] sm:$0xff]
    %v1209 = vld [vmem:[%s1162 + $0x170] sm:$0xff]
    %v1210 = vld [vmem:[%s1162 + $0x178] sm:$0xff]
    %v1211 = vld [vmem:[%s1162 + $0x180] sm:$0xff]
    %v1212 = vld [vmem:[%s1162 + $0x188] sm:$0xff]
    %v1213 = vld [vmem:[%s1162 + $0x190] sm:$0xff]
    %v1214 = vld [vmem:[%s1162 + $0x198] sm:$0xff]
    %v1215 = vld [vmem:[%s1162 + $0x1a0] sm:$0xff]
    %v1216 = vld [vmem:[%s1162 + $0x1a8] sm:$0xff]
    %v1217 = vld [vmem:[%s1162 + $0x1b0] sm:$0xff]
    %v1218 = vld [vmem:[%s1162 + $0x1b8] sm:$0xff]
    %v1219 = vld [vmem:[%s1162 + $0x1c0] sm:$0xff]
    %v1220 = vld [vmem:[%s1162 + $0x1c8] sm:$0xff]
    %v1221 = vld [vmem:[%s1162 + $0x1d0] sm:$0xff]
    %v1222 = vld [vmem:[%s1162 + $0x1d8] sm:$0xff]
    %v1223 = vld [vmem:[%s1162 + $0x1e0] sm:$0xff]
    %v1224 = vld [vmem:[%s1162 + $0x1e8] sm:$0xff]
    %v1225 = vld [vmem:[%s1162 + $0x1f0] sm:$0xff]
    %v1226 = vld [vmem:[%s1162 + $0x1f8] sm:$0xff]
    %s1227 = scalar_lea.vmem [#allocation10], 8
    %v1228 = vld [vmem:[%s1227] sm:$0x3]
    %v1230 = vlaneseq
    %v1231 = vshrl.u32 %v1230, 7
    %v1232 = vsub.s32 0, %v1231
    %v1233 = vrot.slane %v1228, %v1232
    %v1234 = vlaneseq
    %v1235 = vshrl.u32 %v1234, 7
    %v1236 = vsub.s32 1, %v1235
    %v1237 = vrot.slane %v1228, %v1236
    %1240 = vmatprep.subr.mxu0 %v1164
    %1241 = vmatpush1.msra.mxu0 %v1163
    %1242 = vmatprep.subr.mxu0 %v1166
    %1243 = vmatpush1.msra.mxu0 %v1165
    %1244 = vmatprep.subr.mxu0 %v1168
    %1245 = vmatpush1.msra.mxu0 %v1167
    %1246 = vmatprep.subr.mxu0 %v1170
    %1247 = vmatpush1.msra.mxu0 %v1169
    %1248 = vmatprep.subr.mxu0 %v1172
    %1249 = vmatpush1.msra.mxu0 %v1171
    %1250 = vmatprep.subr.mxu0 %v1174
    %1251 = vmatpush1.msra.mxu0 %v1173
    %1252 = vmatprep.subr.mxu0 %v1176
    %1253 = vmatpush1.msra.mxu0 %v1175
    %1254 = vmatprep.subr.mxu0 %v1178
    %1255 = vmatpush1.msra.mxu0 %v1177
    %1256 = vmatprep.subr.mxu0 %v1180
    %1257 = vmatpush1.msra.mxu0 %v1179
    %1258 = vmatprep.subr.mxu0 %v1182
    %1259 = vmatpush1.msra.mxu0 %v1181
    %1260 = vmatprep.subr.mxu0 %v1184
    %1261 = vmatpush1.msra.mxu0 %v1183
    %1262 = vmatprep.subr.mxu0 %v1186
    %1263 = vmatpush1.msra.mxu0 %v1185
    %1264 = vmatprep.subr.mxu0 %v1188
    %1265 = vmatpush1.msra.mxu0 %v1187
    %1266 = vmatprep.subr.mxu0 %v1190
    %1267 = vmatpush1.msra.mxu0 %v1189
    %1268 = vmatprep.subr.mxu0 %v1192
    %1269 = vmatpush1.msra.mxu0 %v1191
    %1270 = vmatprep.subr.mxu0 %v1194
    %1271 = vmatpush1.msra.mxu0 %v1193
    %1272 = vmatprep.subr.mxu0 %v1196
    %1273 = vmatpush1.msra.mxu0 %v1195
    %1274 = vmatprep.subr.mxu0 %v1198
    %1275 = vmatpush1.msra.mxu0 %v1197
    %1276 = vmatprep.subr.mxu0 %v1200
    %1277 = vmatpush1.msra.mxu0 %v1199
    %1278 = vmatprep.subr.mxu0 %v1202
    %1279 = vmatpush1.msra.mxu0 %v1201
    %1280 = vmatprep.subr.mxu0 %v1204
    %1281 = vmatpush1.msra.mxu0 %v1203
    %1282 = vmatprep.subr.mxu0 %v1206
    %1283 = vmatpush1.msra.mxu0 %v1205
    %1284 = vmatprep.subr.mxu0 %v1208
    %1285 = vmatpush1.msra.mxu0 %v1207
    %1286 = vmatprep.subr.mxu0 %v1210
    %1287 = vmatpush1.msra.mxu0 %v1209
    %1288 = vmatprep.subr.mxu0 %v1212
    %1289 = vmatpush1.msra.mxu0 %v1211
    %1290 = vmatprep.subr.mxu0 %v1214
    %1291 = vmatpush1.msra.mxu0 %v1213
    %1292 = vmatprep.subr.mxu0 %v1216
    %1293 = vmatpush1.msra.mxu0 %v1215
    %1294 = vmatprep.subr.mxu0 %v1218
    %1295 = vmatpush1.msra.mxu0 %v1217
    %1296 = vmatprep.subr.mxu0 %v1220
    %1297 = vmatpush1.msra.mxu0 %v1219
    %1298 = vmatprep.subr.mxu0 %v1222
    %1299 = vmatpush1.msra.mxu0 %v1221
    %1300 = vmatprep.subr.mxu0 %v1224
    %1301 = vmatpush1.msra.mxu0 %v1223
    %1302 = vmatprep.subr.mxu0 %v1226
    %1303 = vmatpush1.msra.mxu0 %v1225
    %1304 = vmatprep.mubr.f32.mxu0 %v559
    %1305 = vmatmul.mubr.f32.gmra.mrb[0].mxu0 %v558
    %v1306 = vpop.f32.mrb[0].mxu0
    %v1307 = vadd.f32 %v1233, %v1306
    %v1308 = vpop.f32.mrb[0].mxu0
    %v1309 = vadd.f32 %v1237, %v1308
    %1310 = vdwg.mxu0
    %v1311 = vmax.f32 %v1307, 0.0
    %v1312 = vmax.f32 %v1309, 0.0
    %v1313 = vld [vmem:[#allocation11] sm:$0xff]
    %v1314 = vld [vmem:[#allocation11 + $0x8] sm:$0xff]
    %v1315 = vld [vmem:[#allocation11 + $0x10] sm:$0xff]
    %v1316 = vld [vmem:[#allocation11 + $0x18] sm:$0xff]
    %v1317 = vld [vmem:[#allocation11 + $0x20] sm:$0xff]
    %v1318 = vld [vmem:[#allocation11 + $0x28] sm:$0xff]
    %v1319 = vld [vmem:[#allocation11 + $0x30] sm:$0xff]
    %v1320 = vld [vmem:[#allocation11 + $0x38] sm:$0xff]
    %v1321 = vld [vmem:[#allocation11 + $0x40] sm:$0xff]
    %v1322 = vld [vmem:[#allocation11 + $0x48] sm:$0xff]
    %v1323 = vld [vmem:[#allocation11 + $0x50] sm:$0xff]
    %v1324 = vld [vmem:[#allocation11 + $0x58] sm:$0xff]
    %v1325 = vld [vmem:[#allocation11 + $0x60] sm:$0xff]
    %v1326 = vld [vmem:[#allocation11 + $0x68] sm:$0xff]
    %v1327 = vld [vmem:[#allocation11 + $0x70] sm:$0xff]
    %v1328 = vld [vmem:[#allocation11 + $0x78] sm:$0xff]
    %v1329 = vld [vmem:[#allocation11 + $0x80] sm:$0xff]
    %v1330 = vld [vmem:[#allocation11 + $0x88] sm:$0xff]
    %v1331 = vld [vmem:[#allocation11 + $0x90] sm:$0xff]
    %v1332 = vld [vmem:[#allocation11 + $0x98] sm:$0xff]
    %v1333 = vld [vmem:[#allocation11 + $0xa0] sm:$0xff]
    %v1334 = vld [vmem:[#allocation11 + $0xa8] sm:$0xff]
    %v1335 = vld [vmem:[#allocation11 + $0xb0] sm:$0xff]
    %v1336 = vld [vmem:[#allocation11 + $0xb8] sm:$0xff]
    %v1337 = vld [vmem:[#allocation11 + $0xc0] sm:$0xff]
    %v1338 = vld [vmem:[#allocation11 + $0xc8] sm:$0xff]
    %v1339 = vld [vmem:[#allocation11 + $0xd0] sm:$0xff]
    %v1340 = vld [vmem:[#allocation11 + $0xd8] sm:$0xff]
    %v1341 = vld [vmem:[#allocation11 + $0xe0] sm:$0xff]
    %v1342 = vld [vmem:[#allocation11 + $0xe8] sm:$0xff]
    %v1343 = vld [vmem:[#allocation11 + $0xf0] sm:$0xff]
    %v1344 = vld [vmem:[#allocation11 + $0xf8] sm:$0xff]
    %v1345 = vld [vmem:[#allocation11 + $0x100] sm:$0xff]
    %v1346 = vld [vmem:[#allocation11 + $0x108] sm:$0xff]
    %v1347 = vld [vmem:[#allocation11 + $0x110] sm:$0xff]
    %v1348 = vld [vmem:[#allocation11 + $0x118] sm:$0xff]
    %v1349 = vld [vmem:[#allocation11 + $0x120] sm:$0xff]
    %v1350 = vld [vmem:[#allocation11 + $0x128] sm:$0xff]
    %v1351 = vld [vmem:[#allocation11 + $0x130] sm:$0xff]
    %v1352 = vld [vmem:[#allocation11 + $0x138] sm:$0xff]
    %v1353 = vld [vmem:[#allocation11 + $0x140] sm:$0xff]
    %v1354 = vld [vmem:[#allocation11 + $0x148] sm:$0xff]
    %v1355 = vld [vmem:[#allocation11 + $0x150] sm:$0xff]
    %v1356 = vld [vmem:[#allocation11 + $0x158] sm:$0xff]
    %v1357 = vld [vmem:[#allocation11 + $0x160] sm:$0xff]
    %v1358 = vld [vmem:[#allocation11 + $0x168] sm:$0xff]
    %v1359 = vld [vmem:[#allocation11 + $0x170] sm:$0xff]
    %v1360 = vld [vmem:[#allocation11 + $0x178] sm:$0xff]
    %v1361 = vld [vmem:[#allocation11 + $0x180] sm:$0xff]
    %v1362 = vld [vmem:[#allocation11 + $0x188] sm:$0xff]
    %v1363 = vld [vmem:[#allocation11 + $0x190] sm:$0xff]
    %v1364 = vld [vmem:[#allocation11 + $0x198] sm:$0xff]
    %v1365 = vld [vmem:[#allocation11 + $0x1a0] sm:$0xff]
    %v1366 = vld [vmem:[#allocation11 + $0x1a8] sm:$0xff]
    %v1367 = vld [vmem:[#allocation11 + $0x1b0] sm:$0xff]
    %v1368 = vld [vmem:[#allocation11 + $0x1b8] sm:$0xff]
    %v1369 = vld [vmem:[#allocation11 + $0x1c0] sm:$0xff]
    %v1370 = vld [vmem:[#allocation11 + $0x1c8] sm:$0xff]
    %v1371 = vld [vmem:[#allocation11 + $0x1d0] sm:$0xff]
    %v1372 = vld [vmem:[#allocation11 + $0x1d8] sm:$0xff]
    %v1373 = vld [vmem:[#allocation11 + $0x1e0] sm:$0xff]
    %v1374 = vld [vmem:[#allocation11 + $0x1e8] sm:$0xff]
    %v1375 = vld [vmem:[#allocation11 + $0x1f0] sm:$0xff]
    %v1376 = vld [vmem:[#allocation11 + $0x1f8] sm:$0xff]
    %v1377 = vld [vmem:[#allocation11 + $0x200] sm:$0xff]
    %v1378 = vld [vmem:[#allocation11 + $0x208] sm:$0xff]
    %v1379 = vld [vmem:[#allocation11 + $0x210] sm:$0xff]
    %v1380 = vld [vmem:[#allocation11 + $0x218] sm:$0xff]
    %v1381 = vld [vmem:[#allocation11 + $0x220] sm:$0xff]
    %v1382 = vld [vmem:[#allocation11 + $0x228] sm:$0xff]
    %v1383 = vld [vmem:[#allocation11 + $0x230] sm:$0xff]
    %v1384 = vld [vmem:[#allocation11 + $0x238] sm:$0xff]
    %v1385 = vld [vmem:[#allocation11 + $0x240] sm:$0xff]
    %v1386 = vld [vmem:[#allocation11 + $0x248] sm:$0xff]
    %v1387 = vld [vmem:[#allocation11 + $0x250] sm:$0xff]
    %v1388 = vld [vmem:[#allocation11 + $0x258] sm:$0xff]
    %v1389 = vld [vmem:[#allocation11 + $0x260] sm:$0xff]
    %v1390 = vld [vmem:[#allocation11 + $0x268] sm:$0xff]
    %v1391 = vld [vmem:[#allocation11 + $0x270] sm:$0xff]
    %v1392 = vld [vmem:[#allocation11 + $0x278] sm:$0xff]
    %v1393 = vld [vmem:[#allocation11 + $0x280] sm:$0xff]
    %v1394 = vld [vmem:[#allocation11 + $0x288] sm:$0xff]
    %v1395 = vld [vmem:[#allocation11 + $0x290] sm:$0xff]
    %v1396 = vld [vmem:[#allocation11 + $0x298] sm:$0xff]
    %v1397 = vld [vmem:[#allocation11 + $0x2a0] sm:$0xff]
    %v1398 = vld [vmem:[#allocation11 + $0x2a8] sm:$0xff]
    %v1399 = vld [vmem:[#allocation11 + $0x2b0] sm:$0xff]
    %v1400 = vld [vmem:[#allocation11 + $0x2b8] sm:$0xff]
    %v1401 = vld [vmem:[#allocation11 + $0x2c0] sm:$0xff]
    %v1402 = vld [vmem:[#allocation11 + $0x2c8] sm:$0xff]
    %v1403 = vld [vmem:[#allocation11 + $0x2d0] sm:$0xff]
    %v1404 = vld [vmem:[#allocation11 + $0x2d8] sm:$0xff]
    %v1405 = vld [vmem:[#allocation11 + $0x2e0] sm:$0xff]
    %v1406 = vld [vmem:[#allocation11 + $0x2e8] sm:$0xff]
    %v1407 = vld [vmem:[#allocation11 + $0x2f0] sm:$0xff]
    %v1408 = vld [vmem:[#allocation11 + $0x2f8] sm:$0xff]
    %v1409 = vld [vmem:[#allocation11 + $0x300] sm:$0xff]
    %v1410 = vld [vmem:[#allocation11 + $0x308] sm:$0xff]
    %v1411 = vld [vmem:[#allocation11 + $0x310] sm:$0xff]
    %v1412 = vld [vmem:[#allocation11 + $0x318] sm:$0xff]
    %v1413 = vld [vmem:[#allocation11 + $0x320] sm:$0xff]
    %v1414 = vld [vmem:[#allocation11 + $0x328] sm:$0xff]
    %v1415 = vld [vmem:[#allocation11 + $0x330] sm:$0xff]
    %v1416 = vld [vmem:[#allocation11 + $0x338] sm:$0xff]
    %v1417 = vld [vmem:[#allocation11 + $0x340] sm:$0xff]
    %v1418 = vld [vmem:[#allocation11 + $0x348] sm:$0xff]
    %v1419 = vld [vmem:[#allocation11 + $0x350] sm:$0xff]
    %v1420 = vld [vmem:[#allocation11 + $0x358] sm:$0xff]
    %v1421 = vld [vmem:[#allocation11 + $0x360] sm:$0xff]
    %v1422 = vld [vmem:[#allocation11 + $0x368] sm:$0xff]
    %v1423 = vld [vmem:[#allocation11 + $0x370] sm:$0xff]
    %v1424 = vld [vmem:[#allocation11 + $0x378] sm:$0xff]
    %v1425 = vld [vmem:[#allocation11 + $0x380] sm:$0xff]
    %v1426 = vld [vmem:[#allocation11 + $0x388] sm:$0xff]
    %v1427 = vld [vmem:[#allocation11 + $0x390] sm:$0xff]
    %v1428 = vld [vmem:[#allocation11 + $0x398] sm:$0xff]
    %v1429 = vld [vmem:[#allocation11 + $0x3a0] sm:$0xff]
    %v1430 = vld [vmem:[#allocation11 + $0x3a8] sm:$0xff]
    %v1431 = vld [vmem:[#allocation11 + $0x3b0] sm:$0xff]
    %v1432 = vld [vmem:[#allocation11 + $0x3b8] sm:$0xff]
    %v1433 = vld [vmem:[#allocation11 + $0x3c0] sm:$0xff]
    %v1434 = vld [vmem:[#allocation11 + $0x3c8] sm:$0xff]
    %v1435 = vld [vmem:[#allocation11 + $0x3d0] sm:$0xff]
    %v1436 = vld [vmem:[#allocation11 + $0x3d8] sm:$0xff]
    %v1437 = vld [vmem:[#allocation11 + $0x3e0] sm:$0xff]
    %v1438 = vld [vmem:[#allocation11 + $0x3e8] sm:$0xff]
    %v1439 = vld [vmem:[#allocation11 + $0x3f0] sm:$0xff]
    %v1440 = vld [vmem:[#allocation11 + $0x3f8] sm:$0xff]
    %v1441 = vld [vmem:[#allocation11 + $0x400] sm:$0xff]
    %v1442 = vld [vmem:[#allocation11 + $0x408] sm:$0xff]
    %v1443 = vld [vmem:[#allocation11 + $0x410] sm:$0xff]
    %v1444 = vld [vmem:[#allocation11 + $0x418] sm:$0xff]
    %v1445 = vld [vmem:[#allocation11 + $0x420] sm:$0xff]
    %v1446 = vld [vmem:[#allocation11 + $0x428] sm:$0xff]
    %v1447 = vld [vmem:[#allocation11 + $0x430] sm:$0xff]
    %v1448 = vld [vmem:[#allocation11 + $0x438] sm:$0xff]
    %v1449 = vld [vmem:[#allocation11 + $0x440] sm:$0xff]
    %v1450 = vld [vmem:[#allocation11 + $0x448] sm:$0xff]
    %v1451 = vld [vmem:[#allocation11 + $0x450] sm:$0xff]
    %v1452 = vld [vmem:[#allocation11 + $0x458] sm:$0xff]
    %v1453 = vld [vmem:[#allocation11 + $0x460] sm:$0xff]
    %v1454 = vld [vmem:[#allocation11 + $0x468] sm:$0xff]
    %v1455 = vld [vmem:[#allocation11 + $0x470] sm:$0xff]
    %v1456 = vld [vmem:[#allocation11 + $0x478] sm:$0xff]
    %v1457 = vld [vmem:[#allocation11 + $0x480] sm:$0xff]
    %v1458 = vld [vmem:[#allocation11 + $0x488] sm:$0xff]
    %v1459 = vld [vmem:[#allocation11 + $0x490] sm:$0xff]
    %v1460 = vld [vmem:[#allocation11 + $0x498] sm:$0xff]
    %v1461 = vld [vmem:[#allocation11 + $0x4a0] sm:$0xff]
    %v1462 = vld [vmem:[#allocation11 + $0x4a8] sm:$0xff]
    %v1463 = vld [vmem:[#allocation11 + $0x4b0] sm:$0xff]
    %v1464 = vld [vmem:[#allocation11 + $0x4b8] sm:$0xff]
    %v1465 = vld [vmem:[#allocation11 + $0x4c0] sm:$0xff]
    %v1466 = vld [vmem:[#allocation11 + $0x4c8] sm:$0xff]
    %v1467 = vld [vmem:[#allocation11 + $0x4d0] sm:$0xff]
    %v1468 = vld [vmem:[#allocation11 + $0x4d8] sm:$0xff]
    %v1469 = vld [vmem:[#allocation11 + $0x4e0] sm:$0xff]
    %v1470 = vld [vmem:[#allocation11 + $0x4e8] sm:$0xff]
    %v1471 = vld [vmem:[#allocation11 + $0x4f0] sm:$0xff]
    %v1472 = vld [vmem:[#allocation11 + $0x4f8] sm:$0xff]
    %v1473 = vld [vmem:[#allocation13] sm:$0x1]
    %v1475 = vlaneseq
    %v1476 = vshrl.u32 %v1475, 7
    %v1477 = vsub.s32 0, %v1476
    %v1478 = vrot.slane %v1473, %v1477
    %1480 = vmatprep.subr.mxu0 0.0
    %1481 = vmatpush1.msra.mxu0 %v1313
    %1482 = vmatprep.subr.mxu0 0.0
    %1483 = vmatpush1.msra.mxu0 %v1314
    %1484 = vmatprep.subr.mxu0 0.0
    %1485 = vmatpush1.msra.mxu0 %v1315
    %1486 = vmatprep.subr.mxu0 0.0
    %1487 = vmatpush1.msra.mxu0 %v1316
    %1488 = vmatprep.subr.mxu0 0.0
    %1489 = vmatpush1.msra.mxu0 %v1317
    %1490 = vmatprep.subr.mxu0 0.0
    %1491 = vmatpush1.msra.mxu0 %v1318
    %1492 = vmatprep.subr.mxu0 0.0
    %1493 = vmatpush1.msra.mxu0 %v1319
    %1494 = vmatprep.subr.mxu0 0.0
    %1495 = vmatpush1.msra.mxu0 %v1320
    %1496 = vmatprep.subr.mxu0 0.0
    %1497 = vmatpush1.msra.mxu0 %v1321
    %1498 = vmatprep.subr.mxu0 0.0
    %1499 = vmatpush1.msra.mxu0 %v1322
    %1500 = vmatprep.subr.mxu0 0.0
    %1501 = vmatpush1.msra.mxu0 %v1323
    %1502 = vmatprep.subr.mxu0 0.0
    %1503 = vmatpush1.msra.mxu0 %v1324
    %1504 = vmatprep.subr.mxu0 0.0
    %1505 = vmatpush1.msra.mxu0 %v1325
    %1506 = vmatprep.subr.mxu0 0.0
    %1507 = vmatpush1.msra.mxu0 %v1326
    %1508 = vmatprep.subr.mxu0 0.0
    %1509 = vmatpush1.msra.mxu0 %v1327
    %1510 = vmatprep.subr.mxu0 0.0
    %1511 = vmatpush1.msra.mxu0 %v1328
    %1512 = vmatprep.subr.mxu0 0.0
    %1513 = vmatpush1.msra.mxu0 %v1329
    %1514 = vmatprep.subr.mxu0 0.0
    %1515 = vmatpush1.msra.mxu0 %v1330
    %1516 = vmatprep.subr.mxu0 0.0
    %1517 = vmatpush1.msra.mxu0 %v1331
    %1518 = vmatprep.subr.mxu0 0.0
    %1519 = vmatpush1.msra.mxu0 %v1332
    %1520 = vmatprep.subr.mxu0 0.0
    %1521 = vmatpush1.msra.mxu0 %v1333
    %1522 = vmatprep.subr.mxu0 0.0
    %1523 = vmatpush1.msra.mxu0 %v1334
    %1524 = vmatprep.subr.mxu0 0.0
    %1525 = vmatpush1.msra.mxu0 %v1335
    %1526 = vmatprep.subr.mxu0 0.0
    %1527 = vmatpush1.msra.mxu0 %v1336
    %1528 = vmatprep.subr.mxu0 0.0
    %1529 = vmatpush1.msra.mxu0 %v1337
    %1530 = vmatprep.subr.mxu0 0.0
    %1531 = vmatpush1.msra.mxu0 %v1338
    %1532 = vmatprep.subr.mxu0 0.0
    %1533 = vmatpush1.msra.mxu0 %v1339
    %1534 = vmatprep.subr.mxu0 0.0
    %1535 = vmatpush1.msra.mxu0 %v1340
    %1536 = vmatprep.subr.mxu0 0.0
    %1537 = vmatpush1.msra.mxu0 %v1341
    %1538 = vmatprep.subr.mxu0 0.0
    %1539 = vmatpush1.msra.mxu0 %v1342
    %1540 = vmatprep.subr.mxu0 0.0
    %1541 = vmatpush1.msra.mxu0 %v1343
    %1542 = vmatprep.subr.mxu0 0.0
    %1543 = vmatpush1.msra.mxu0 %v1344
    %1544 = vmatprep.mubr.f32.mxu0 %v708
    %1545 = vmatmul.mubr.f32.gmra.mrb[0].mxu0 %v707
    %v1546 = vpop.f32.mrb[0].mxu0
    %v1547 = vadd.f32 %v1478, %v1546
    %v1548 = vpop.f32.mrb[0].mxu0
    %1549 = vdwg.mxu0
    %1550 = vmatprep.subr.mxu0 0.0
    %1551 = vmatpush1.msra.mxu0 %v1345
    %1552 = vmatprep.subr.mxu0 0.0
    %1553 = vmatpush1.msra.mxu0 %v1346
    %1554 = vmatprep.subr.mxu0 0.0
    %1555 = vmatpush1.msra.mxu0 %v1347
    %1556 = vmatprep.subr.mxu0 0.0
    %1557 = vmatpush1.msra.mxu0 %v1348
    %1558 = vmatprep.subr.mxu0 0.0
    %1559 = vmatpush1.msra.mxu0 %v1349
    %1560 = vmatprep.subr.mxu0 0.0
    %1561 = vmatpush1.msra.mxu0 %v1350
    %1562 = vmatprep.subr.mxu0 0.0
    %1563 = vmatpush1.msra.mxu0 %v1351
    %1564 = vmatprep.subr.mxu0 0.0
    %1565 = vmatpush1.msra.mxu0 %v1352
    %1566 = vmatprep.subr.mxu0 0.0
    %1567 = vmatpush1.msra.mxu0 %v1353
    %1568 = vmatprep.subr.mxu0 0.0
    %1569 = vmatpush1.msra.mxu0 %v1354
    %1570 = vmatprep.subr.mxu0 0.0
    %1571 = vmatpush1.msra.mxu0 %v1355
    %1572 = vmatprep.subr.mxu0 0.0
    %1573 = vmatpush1.msra.mxu0 %v1356
    %1574 = vmatprep.subr.mxu0 0.0
    %1575 = vmatpush1.msra.mxu0 %v1357
    %1576 = vmatprep.subr.mxu0 0.0
    %1577 = vmatpush1.msra.mxu0 %v1358
    %1578 = vmatprep.subr.mxu0 0.0
    %1579 = vmatpush1.msra.mxu0 %v1359
    %1580 = vmatprep.subr.mxu0 0.0
    %1581 = vmatpush1.msra.mxu0 %v1360
    %1582 = vmatprep.subr.mxu0 0.0
    %1583 = vmatpush1.msra.mxu0 %v1361
    %1584 = vmatprep.subr.mxu0 0.0
    %1585 = vmatpush1.msra.mxu0 %v1362
    %1586 = vmatprep.subr.mxu0 0.0
    %1587 = vmatpush1.msra.mxu0 %v1363
    %1588 = vmatprep.subr.mxu0 0.0
    %1589 = vmatpush1.msra.mxu0 %v1364
    %1590 = vmatprep.subr.mxu0 0.0
    %1591 = vmatpush1.msra.mxu0 %v1365
    %1592 = vmatprep.subr.mxu0 0.0
    %1593 = vmatpush1.msra.mxu0 %v1366
    %1594 = vmatprep.subr.mxu0 0.0
    %1595 = vmatpush1.msra.mxu0 %v1367
    %1596 = vmatprep.subr.mxu0 0.0
    %1597 = vmatpush1.msra.mxu0 %v1368
    %1598 = vmatprep.subr.mxu0 0.0
    %1599 = vmatpush1.msra.mxu0 %v1369
    %1600 = vmatprep.subr.mxu0 0.0
    %1601 = vmatpush1.msra.mxu0 %v1370
    %1602 = vmatprep.subr.mxu0 0.0
    %1603 = vmatpush1.msra.mxu0 %v1371
    %1604 = vmatprep.subr.mxu0 0.0
    %1605 = vmatpush1.msra.mxu0 %v1372
    %1606 = vmatprep.subr.mxu0 0.0
    %1607 = vmatpush1.msra.mxu0 %v1373
    %1608 = vmatprep.subr.mxu0 0.0
    %1609 = vmatpush1.msra.mxu0 %v1374
    %1610 = vmatprep.subr.mxu0 0.0
    %1611 = vmatpush1.msra.mxu0 %v1375
    %1612 = vmatprep.subr.mxu0 0.0
    %1613 = vmatpush1.msra.mxu0 %v1376
    %1614 = vmatprep.mubr.f32.mxu0 %v859
    %1615 = vmatmul.mubr.f32.gmra.mrb[0].mxu0 %v858
    %v1616 = vpop.f32.mrb[0].mxu0
    %v1617 = vadd.f32 %v1547, %v1616
    %v1618 = vpop.f32.mrb[0].mxu0
    %1619 = vdwg.mxu0
    %1620 = vmatprep.subr.mxu0 0.0
    %1621 = vmatpush1.msra.mxu0 %v1377
    %1622 = vmatprep.subr.mxu0 0.0
    %1623 = vmatpush1.msra.mxu0 %v1378
    %1624 = vmatprep.subr.mxu0 0.0
    %1625 = vmatpush1.msra.mxu0 %v1379
    %1626 = vmatprep.subr.mxu0 0.0
    %1627 = vmatpush1.msra.mxu0 %v1380
    %1628 = vmatprep.subr.mxu0 0.0
    %1629 = vmatpush1.msra.mxu0 %v1381
    %1630 = vmatprep.subr.mxu0 0.0
    %1631 = vmatpush1.msra.mxu0 %v1382
    %1632 = vmatprep.subr.mxu0 0.0
    %1633 = vmatpush1.msra.mxu0 %v1383
    %1634 = vmatprep.subr.mxu0 0.0
    %1635 = vmatpush1.msra.mxu0 %v1384
    %1636 = vmatprep.subr.mxu0 0.0
    %1637 = vmatpush1.msra.mxu0 %v1385
    %1638 = vmatprep.subr.mxu0 0.0
    %1639 = vmatpush1.msra.mxu0 %v1386
    %1640 = vmatprep.subr.mxu0 0.0
    %1641 = vmatpush1.msra.mxu0 %v1387
    %1642 = vmatprep.subr.mxu0 0.0
    %1643 = vmatpush1.msra.mxu0 %v1388
    %1644 = vmatprep.subr.mxu0 0.0
    %1645 = vmatpush1.msra.mxu0 %v1389
    %1646 = vmatprep.subr.mxu0 0.0
    %1647 = vmatpush1.msra.mxu0 %v1390
    %1648 = vmatprep.subr.mxu0 0.0
    %1649 = vmatpush1.msra.mxu0 %v1391
    %1650 = vmatprep.subr.mxu0 0.0
    %1651 = vmatpush1.msra.mxu0 %v1392
    %1652 = vmatprep.subr.mxu0 0.0
    %1653 = vmatpush1.msra.mxu0 %v1393
    %1654 = vmatprep.subr.mxu0 0.0
    %1655 = vmatpush1.msra.mxu0 %v1394
    %1656 = vmatprep.subr.mxu0 0.0
    %1657 = vmatpush1.msra.mxu0 %v1395
    %1658 = vmatprep.subr.mxu0 0.0
    %1659 = vmatpush1.msra.mxu0 %v1396
    %1660 = vmatprep.subr.mxu0 0.0
    %1661 = vmatpush1.msra.mxu0 %v1397
    %1662 = vmatprep.subr.mxu0 0.0
    %1663 = vmatpush1.msra.mxu0 %v1398
    %1664 = vmatprep.subr.mxu0 0.0
    %1665 = vmatpush1.msra.mxu0 %v1399
    %1666 = vmatprep.subr.mxu0 0.0
    %1667 = vmatpush1.msra.mxu0 %v1400
    %1668 = vmatprep.subr.mxu0 0.0
    %1669 = vmatpush1.msra.mxu0 %v1401
    %1670 = vmatprep.subr.mxu0 0.0
    %1671 = vmatpush1.msra.mxu0 %v1402
    %1672 = vmatprep.subr.mxu0 0.0
    %1673 = vmatpush1.msra.mxu0 %v1403
    %1674 = vmatprep.subr.mxu0 0.0
    %1675 = vmatpush1.msra.mxu0 %v1404
    %1676 = vmatprep.subr.mxu0 0.0
    %1677 = vmatpush1.msra.mxu0 %v1405
    %1678 = vmatprep.subr.mxu0 0.0
    %1679 = vmatpush1.msra.mxu0 %v1406
    %1680 = vmatprep.subr.mxu0 0.0
    %1681 = vmatpush1.msra.mxu0 %v1407
    %1682 = vmatprep.subr.mxu0 0.0
    %1683 = vmatpush1.msra.mxu0 %v1408
    %1684 = vmatprep.mubr.f32.mxu0 %v1010
    %1685 = vmatmul.mubr.f32.gmra.mrb[0].mxu0 %v1009
    %v1686 = vpop.f32.mrb[0].mxu0
    %v1687 = vadd.f32 %v1617, %v1686
    %v1688 = vpop.f32.mrb[0].mxu0
    %1689 = vdwg.mxu0
    %1690 = vmatprep.subr.mxu0 0.0
    %1691 = vmatpush1.msra.mxu0 %v1409
    %1692 = vmatprep.subr.mxu0 0.0
    %1693 = vmatpush1.msra.mxu0 %v1410
    %1694 = vmatprep.subr.mxu0 0.0
    %1695 = vmatpush1.msra.mxu0 %v1411
    %1696 = vmatprep.subr.mxu0 0.0
    %1697 = vmatpush1.msra.mxu0 %v1412
    %1698 = vmatprep.subr.mxu0 0.0
    %1699 = vmatpush1.msra.mxu0 %v1413
    %1700 = vmatprep.subr.mxu0 0.0
    %1701 = vmatpush1.msra.mxu0 %v1414
    %1702 = vmatprep.subr.mxu0 0.0
    %1703 = vmatpush1.msra.mxu0 %v1415
    %1704 = vmatprep.subr.mxu0 0.0
    %1705 = vmatpush1.msra.mxu0 %v1416
    %1706 = vmatprep.subr.mxu0 0.0
    %1707 = vmatpush1.msra.mxu0 %v1417
    %1708 = vmatprep.subr.mxu0 0.0
    %1709 = vmatpush1.msra.mxu0 %v1418
    %1710 = vmatprep.subr.mxu0 0.0
    %1711 = vmatpush1.msra.mxu0 %v1419
    %1712 = vmatprep.subr.mxu0 0.0
    %1713 = vmatpush1.msra.mxu0 %v1420
    %1714 = vmatprep.subr.mxu0 0.0
    %1715 = vmatpush1.msra.mxu0 %v1421
    %1716 = vmatprep.subr.mxu0 0.0
    %1717 = vmatpush1.msra.mxu0 %v1422
    %1718 = vmatprep.subr.mxu0 0.0
    %1719 = vmatpush1.msra.mxu0 %v1423
    %1720 = vmatprep.subr.mxu0 0.0
    %1721 = vmatpush1.msra.mxu0 %v1424
    %1722 = vmatprep.subr.mxu0 0.0
    %1723 = vmatpush1.msra.mxu0 %v1425
    %1724 = vmatprep.subr.mxu0 0.0
    %1725 = vmatpush1.msra.mxu0 %v1426
    %1726 = vmatprep.subr.mxu0 0.0
    %1727 = vmatpush1.msra.mxu0 %v1427
    %1728 = vmatprep.subr.mxu0 0.0
    %1729 = vmatpush1.msra.mxu0 %v1428
    %1730 = vmatprep.subr.mxu0 0.0
    %1731 = vmatpush1.msra.mxu0 %v1429
    %1732 = vmatprep.subr.mxu0 0.0
    %1733 = vmatpush1.msra.mxu0 %v1430
    %1734 = vmatprep.subr.mxu0 0.0
    %1735 = vmatpush1.msra.mxu0 %v1431
    %1736 = vmatprep.subr.mxu0 0.0
    %1737 = vmatpush1.msra.mxu0 %v1432
    %1738 = vmatprep.subr.mxu0 0.0
    %1739 = vmatpush1.msra.mxu0 %v1433
    %1740 = vmatprep.subr.mxu0 0.0
    %1741 = vmatpush1.msra.mxu0 %v1434
    %1742 = vmatprep.subr.mxu0 0.0
    %1743 = vmatpush1.msra.mxu0 %v1435
    %1744 = vmatprep.subr.mxu0 0.0
    %1745 = vmatpush1.msra.mxu0 %v1436
    %1746 = vmatprep.subr.mxu0 0.0
    %1747 = vmatpush1.msra.mxu0 %v1437
    %1748 = vmatprep.subr.mxu0 0.0
    %1749 = vmatpush1.msra.mxu0 %v1438
    %1750 = vmatprep.subr.mxu0 0.0
    %1751 = vmatpush1.msra.mxu0 %v1439
    %1752 = vmatprep.subr.mxu0 0.0
    %1753 = vmatpush1.msra.mxu0 %v1440
    %1754 = vmatprep.mubr.f32.mxu0 %v1161
    %1755 = vmatmul.mubr.f32.gmra.mrb[0].mxu0 %v1160
    %v1756 = vpop.f32.mrb[0].mxu0
    %v1757 = vadd.f32 %v1687, %v1756
    %v1758 = vpop.f32.mrb[0].mxu0
    %1759 = vdwg.mxu0
    %1760 = vmatprep.subr.mxu0 0.0
    %1761 = vmatpush1.msra.mxu0 %v1441
    %1762 = vmatprep.subr.mxu0 0.0
    %1763 = vmatpush1.msra.mxu0 %v1442
    %1764 = vmatprep.subr.mxu0 0.0
    %1765 = vmatpush1.msra.mxu0 %v1443
    %1766 = vmatprep.subr.mxu0 0.0
    %1767 = vmatpush1.msra.mxu0 %v1444
    %1768 = vmatprep.subr.mxu0 0.0
    %1769 = vmatpush1.msra.mxu0 %v1445
    %1770 = vmatprep.subr.mxu0 0.0
    %1771 = vmatpush1.msra.mxu0 %v1446
    %1772 = vmatprep.subr.mxu0 0.0
    %1773 = vmatpush1.msra.mxu0 %v1447
    %1774 = vmatprep.subr.mxu0 0.0
    %1775 = vmatpush1.msra.mxu0 %v1448
    %1776 = vmatprep.subr.mxu0 0.0
    %1777 = vmatpush1.msra.mxu0 %v1449
    %1778 = vmatprep.subr.mxu0 0.0
    %1779 = vmatpush1.msra.mxu0 %v1450
    %1780 = vmatprep.subr.mxu0 0.0
    %1781 = vmatpush1.msra.mxu0 %v1451
    %1782 = vmatprep.subr.mxu0 0.0
    %1783 = vmatpush1.msra.mxu0 %v1452
    %1784 = vmatprep.subr.mxu0 0.0
    %1785 = vmatpush1.msra.mxu0 %v1453
    %1786 = vmatprep.subr.mxu0 0.0
    %1787 = vmatpush1.msra.mxu0 %v1454
    %1788 = vmatprep.subr.mxu0 0.0
    %1789 = vmatpush1.msra.mxu0 %v1455
    %1790 = vmatprep.subr.mxu0 0.0
    %1791 = vmatpush1.msra.mxu0 %v1456
    %1792 = vmatprep.subr.mxu0 0.0
    %1793 = vmatpush1.msra.mxu0 %v1457
    %1794 = vmatprep.subr.mxu0 0.0
    %1795 = vmatpush1.msra.mxu0 %v1458
    %1796 = vmatprep.subr.mxu0 0.0
    %1797 = vmatpush1.msra.mxu0 %v1459
    %1798 = vmatprep.subr.mxu0 0.0
    %1799 = vmatpush1.msra.mxu0 %v1460
    %1800 = vmatprep.subr.mxu0 0.0
    %1801 = vmatpush1.msra.mxu0 %v1461
    %1802 = vmatprep.subr.mxu0 0.0
    %1803 = vmatpush1.msra.mxu0 %v1462
    %1804 = vmatprep.subr.mxu0 0.0
    %1805 = vmatpush1.msra.mxu0 %v1463
    %1806 = vmatprep.subr.mxu0 0.0
    %1807 = vmatpush1.msra.mxu0 %v1464
    %1808 = vmatprep.subr.mxu0 0.0
    %1809 = vmatpush1.msra.mxu0 %v1465
    %1810 = vmatprep.subr.mxu0 0.0
    %1811 = vmatpush1.msra.mxu0 %v1466
    %1812 = vmatprep.subr.mxu0 0.0
    %1813 = vmatpush1.msra.mxu0 %v1467
    %1814 = vmatprep.subr.mxu0 0.0
    %1815 = vmatpush1.msra.mxu0 %v1468
    %1816 = vmatprep.subr.mxu0 0.0
    %1817 = vmatpush1.msra.mxu0 %v1469
    %1818 = vmatprep.subr.mxu0 0.0
    %1819 = vmatpush1.msra.mxu0 %v1470
    %1820 = vmatprep.subr.mxu0 0.0
    %1821 = vmatpush1.msra.mxu0 %v1471
    %1822 = vmatprep.subr.mxu0 0.0
    %1823 = vmatpush1.msra.mxu0 %v1472
    %1824 = vmatprep.mubr.f32.mxu0 %v1312
    %1825 = vmatmul.mubr.f32.gmra.mrb[0].mxu0 %v1311
    %v1826 = vpop.f32.mrb[0].mxu0
    %v1827 = vadd.f32 %v1757, %v1826
    %v1828 = vpop.f32.mrb[0].mxu0
    %1829 = vdwg.mxu0
    %1830 = vst [vmem:[#allocation14] sm:$0xff] %v1827
    // Predicated region
    $region58: #{tpu_custom_call.1} parent=1 // pred_check
      _
    $region59: #{tpu_custom_call.1} parent=1 // pred_check_branch
      %1832 = sbr.rel (0) target = $region61
    $region60: #{tpu_custom_call.1} parent=1 // pred_region
      %s1834 = ssub.s32 128, 128
      %1835 = vsyncadd [#allocation4], %s1834
      %s1837 = sshll.u32 [#allocation14], 4
      %s1838 = int_to_ptr.vmem [resolvable:$true] %s1837
      %1840 = dma.vmem_to_hbm [thread:$0]  %s1838, 128, %s7, [#allocation4]
    $region61: #{tpu_custom_call.1} parent=1 // pred_fallthru
      _
    // Predicated region
    $region62: #{tpu_custom_call.1} parent=1 // pred_check
      _
    $region63: #{tpu_custom_call.1} parent=1 // pred_check_branch
      %1842 = sbr.rel (0) target = $region65
    $region64: #{tpu_custom_call.1} parent=1 // pred_region
      %1843 = dma.done [#allocation4], 128
    $region65: #{tpu_custom_call.1} parent=1 // pred_fallthru
      _
    %1844 = vsyncpa [#allocation3], 1
    %1845 = vsyncpa [#allocation6], 1
    %1846 = vsyncpa [#allocation9], 1
    %1847 = vsyncpa [#allocation12], 1
    %1848 = vsyncpa [#allocation4], 1

</llo_original>
